<compile_context>
chip_gen: v6e
topology: v6e:2x2x1
jax: 0.10.0
libtpu: 0.0.40
codegen_flags: <defaults>
</compile_context>

<pallas_src>
import functools

import jax
import jax.numpy as jnp
from jax.experimental import pallas as pl
from jax.experimental.pallas import tpu as pltpu

LRELU_SLOPE = 0.1


def _round_up(n, m):
    return ((n + m - 1) // m) * m


def _resblock2_kernel(xl_ref, xc_ref, xr_ref, cond_ref, w1_ref, w2_ref, b2_ref,
                      o_ref, *, dilations, lrelu_slope, t_tile, halo, t_true):
    # xl_ref/xr_ref: (1, C, 128) neighbouring 128-column blocks (halo source)
    # xc_ref:        (1, C, T_TILE) current tile of x (NCT native, T on lanes)
    # cond_ref:      (1, L*inter, 1)  = b1 + wc @ g + bc  (per batch element)
    # w1_ref:        (L, inter, 3*C)   tap-fused conv1 weights (bf16)
    # w2_ref:        (L, C, 3*half)    tap-fused conv2 weights (bf16)
    # b2_ref:        (L, C, 1)         conv2 bias (f32)
    # o_ref:         (1, C, T_TILE)
    f32, bf16 = jnp.float32, jnp.bfloat16
    t = pl.program_id(1)
    inter = w1_ref.shape[1]
    half = inter // 2

    # Assemble the haloed window (C, t_tile + 2*halo), residual kept in f32.
    left = xl_ref[0][:, 128 - halo:]
    right = xr_ref[0][:, :halo]
    x = jnp.concatenate([left, xc_ref[0], right], axis=1).astype(f32)
    w0 = x.shape[1]

    # Hoisted global-position validity mask: positions outside [0, t_true) must
    # read as zero (the Conv1d zero padding), regardless of tile-local edges.
    gpos = t * t_tile - halo + jax.lax.broadcasted_iota(jnp.int32, (1, w0), 1)
    valid0 = (gpos >= 0) & (gpos < t_true)

    cond_all = cond_ref[0].astype(f32)            # (L*inter, 1)

    def conv3(w_bf16, a_bf16, d):
        # "valid" k=3 dilated conv as ONE MXU matmul: stack the three taps along
        # sublanes (static, shifted slices of the window) -> (3*C_in, W-2d).
        wd = a_bf16.shape[1] - 2 * d
        stk = jnp.concatenate(
            [a_bf16[:, :wd], a_bf16[:, d:d + wd], a_bf16[:, 2 * d:]], axis=0)
        return jnp.dot(w_bf16, stk, preferred_element_type=f32)

    off = 0
    for i, d in enumerate(dilations):             # unrolled at trace time
        wcur = x.shape[1]
        xt = jnp.where(valid0[:, off:off + wcur],
                       jax.nn.leaky_relu(x, lrelu_slope), 0.0)

        # conv1: Conv1d(C -> inter, k=3, dilation=d); bias folded into cond.
        y1 = conv3(w1_ref[i].astype(bf16), xt.astype(bf16), d)
        y1 = y1 + cond_all[i * inter:(i + 1) * inter]          # (inter, wcur-2d)

        gate = jnp.tanh(y1[:half]) * jax.nn.sigmoid(y1[half:])  # f32 gate math
        gate = jnp.where(valid0[:, off + d: off + d + gate.shape[1]], gate, 0.0)

        # conv2: Conv1d(half -> C, k=3, dilation=1)
        y2 = conv3(w2_ref[i].astype(bf16), gate.astype(bf16), 1)
        # residual on the shrunken valid window
        x = y2 + b2_ref[i].astype(f32) + x[:, d + 1: wcur - (d + 1)]
        off += d + 1

    # After all iterations the valid window is exactly T_TILE wide.
    o_ref[0] = x.astype(o_ref.dtype)


def pack_params(w1, b1, w2, b2, wc, bc, compute_dtype=jnp.bfloat16):
    """One-time (parameter-load time) repack of the effective (post weight-norm)
    parameters into the kernel layout: tap-fused bf16 conv weights, f32 biases.

    w1: (L, inter, C, 3)   conv1 torch-layout weights
    b1: (L, inter)
    w2: (L, C, inter//2, 3) conv2 torch-layout weights
    b2: (L, C)
    wc: (L, inter, GIN)    conditioning Linear weights
    bc: (L, inter)
    """
    L, inter, C, K = w1.shape
    half = w2.shape[2]
    # Fused tap layout: W[:, k*Cin + c] == w[:, c, k]  (matches the sublane stack).
    w1f = jnp.transpose(w1, (0, 1, 3, 2)).reshape(L, inter, K * C).astype(compute_dtype)
    w2f = jnp.transpose(w2, (0, 1, 3, 2)).reshape(L, C, K * half).astype(compute_dtype)
    return dict(
        w1=w1f,
        w2=w2f,
        b1=b1.astype(jnp.float32),
        b2=b2[:, :, None].astype(jnp.float32),     # (L, C, 1) lane-broadcast column
        wc=wc.astype(jnp.float32),
        bc=bc.astype(jnp.float32),
    )


def resblock2(x, g, params, *, dilations=(1, 3, 5), lrelu_slope=LRELU_SLOPE,
              t_tile=512):
    """ResBlock2 forward.  x: (B, C, T) NCT;  g: (B, GIN);  params: pack_params()."""
    w1f, w2f = params["w1"], params["w2"]
    b1, b2k, wc, bc = params["b1"], params["b2"], params["wc"], params["bc"]
    B, C, T = x.shape
    L, inter, _ = w1f.shape
    half = w2f.shape[2] // 3
    assert L == len(dilations)

    halo = sum(d + 1 for d in dilations)           # 12 for (1, 3, 5)
    assert halo <= 128

    # Lane-dense tiling: T_TILE multiple of 128; pad T up to nT * T_TILE.
    # (On v7x prefer smaller t_tile, e.g. 512, for the 64 MiB VMEM.)
    t_tile = _round_up(max(int(t_tile), 128), 128)
    t_tile = min(t_tile, _round_up(T, 128))
    nT = (T + t_tile - 1) // t_tile
    T_pad = nT * t_tile
    x_p = x if T_pad == T else jnp.pad(x, ((0, 0), (0, 0), (0, T_pad - T)))
    R = t_tile // 128
    nblk = T_pad // 128

    # T-invariant conditioning (tiny, done once per call in XLA):
    #   cond = conv1_bias + wc @ g + cond_bias
    cond = jnp.einsum("lig,bg->bli", wc, g.astype(jnp.float32)) + bc[None] + b1[None]
    cond = cond.reshape(B, L * inter, 1)

    kernel = functools.partial(
        _resblock2_kernel, dilations=tuple(dilations), lrelu_slope=lrelu_slope,
        t_tile=t_tile, halo=halo, t_true=T)

    flops = B * L * T_pad * 6 * (inter * C + C * half)
    transcendentals = B * L * T_pad * inter
    bytes_accessed = (2 * B * C * T_pad * 4 + B * nT * 2 * C * 128 * 4
                      + w1f.size * 2 + w2f.size * 2 + cond.size * 4 + b2k.size * 4)

    out = pl.pallas_call(
        kernel,
        out_shape=jax.ShapeDtypeStruct((B, C, T_pad), x.dtype),
        grid_spec=pltpu.PrefetchScalarGridSpec(
            num_scalar_prefetch=0,
            grid=(B, nT),
            in_specs=[
                # previous / current / next pieces of x (halo source blocks are
                # clamped at the sequence ends; out-of-sequence columns are
                # masked inside the kernel by global position).
                pl.BlockSpec((1, C, 128),
                             lambda b, t: (b, 0, jnp.maximum(t * R - 1, 0))),
                pl.BlockSpec((1, C, t_tile), lambda b, t: (b, 0, t)),
                pl.BlockSpec((1, C, 128),
                             lambda b, t: (b, 0, jnp.minimum(t * R + R, nblk - 1))),
                pl.BlockSpec((1, L * inter, 1), lambda b, t: (b, 0, 0)),
                pl.BlockSpec(w1f.shape, lambda b, t: (0, 0, 0)),
                pl.BlockSpec(w2f.shape, lambda b, t: (0, 0, 0)),
                pl.BlockSpec(b2k.shape, lambda b, t: (0, 0, 0)),
            ],
            out_specs=pl.BlockSpec((1, C, t_tile), lambda b, t: (b, 0, t)),
        ),
        compiler_params=pltpu.CompilerParams(
            dimension_semantics=("parallel", "parallel"),
            vmem_limit_bytes=48 * 1024 * 1024,
        ),
        cost_estimate=pl.CostEstimate(flops=flops, transcendentals=transcendentals,
                                      bytes_accessed=bytes_accessed),
    )(x_p, x_p, x_p, cond, w1f, w2f, b2k)

    return out if T_pad == T else out[:, :, :T]


def resblock2_ref(x, g, w1, b1, w2, b2, wc, bc, dilations=(1, 3, 5),
                  lrelu_slope=LRELU_SLOPE):
    """Pure-JAX f32 reference of the same forward pass (XLA convs)."""
    prec = jax.lax.Precision.HIGHEST
    for i, d in enumerate(dilations):
        xt = jax.nn.leaky_relu(x, lrelu_slope)
        xt = jax.lax.conv_general_dilated(
            xt, w1[i], window_strides=(1,), padding=[(d, d)], rhs_dilation=(d,),
            dimension_numbers=("NCH", "OIH", "NCH"), precision=prec,
        ) + b1[i][None, :, None]
        gs = jnp.sum(g[:, None, :] * wc[i][None, :, :], axis=-1) + bc[i][None, :]
        half = xt.shape[1] // 2
        xa, xb = xt[:, :half, :], xt[:, half:, :]
        sa, sb = gs[:, :half], gs[:, half:]
        xt = jnp.tanh(xa + sa[:, :, None]) * jax.nn.sigmoid(xb + sb[:, :, None])
        xt = jax.lax.conv_general_dilated(
            xt, w2[i], window_strides=(1,), padding=[(1, 1)], rhs_dilation=(1,),
            dimension_numbers=("NCH", "OIH", "NCH"), precision=prec,
        ) + b2[i][None, :, None]
        x = xt + x
    return x


if __name__ == "__main__":
    # Small shapes; T deliberately not a multiple of 128 and > t_tile so that the
    # padding/mask path and the multi-tile halo path are both exercised.
    B, C, T = 2, 32, 300
    GIN = 16
    K = 3
    dilations = (1, 3, 5)
    L = len(dilations)
    inter = C // 16 * 16              # inter_channels = channels // 16 * 16
    half = inter // 2

    key = jax.random.PRNGKey(0)
    ks = jax.random.split(key, 8)
    x = jax.random.normal(ks[0], (B, C, T), dtype=jnp.float32)
    g = jax.random.normal(ks[1], (B, GIN), dtype=jnp.float32)
    # Effective (post weight-norm) parameters; init_weights uses small normal init.
    w1 = jax.random.normal(ks[2], (L, inter, C, K), dtype=jnp.float32) * 0.05
    b1 = jax.random.normal(ks[3], (L, inter), dtype=jnp.float32) * 0.05
    w2 = jax.random.normal(ks[4], (L, C, half, K), dtype=jnp.float32) * 0.05
    b2 = jax.random.normal(ks[5], (L, C), dtype=jnp.float32) * 0.05
    wc = jax.random.normal(ks[6], (L, inter, GIN), dtype=jnp.float32) * 0.05
    bc = jax.random.normal(ks[7], (L, inter), dtype=jnp.float32) * 0.05

    params = pack_params(w1, b1, w2, b2, wc, bc)          # load-time repack (bf16)
    out = resblock2(x, g, params, dilations=dilations, t_tile=128)
    out = jax.block_until_ready(out)

    ref = resblock2_ref(x, g, w1, b1, w2, b2, wc, bc, dilations=dilations)
    assert out.shape == ref.shape == (B, C, T)
    # bf16 MXU operands (f32 accumulation) vs. f32/HIGHEST reference -> relaxed tol.
    max_err = float(jnp.max(jnp.abs(out - ref)))
    assert max_err < 5e-2, f"max_err={max_err}"

    print("KERNEL_OK")
</pallas_src>

<mosaic_0001>
module attributes {stable_mosaic.version = 11 : i64} {
  func.func @_resblock2_kernel(%arg0: i32, %arg1: i32, %arg2: memref<1x32x128xf32, #tpu.memory_space<vmem>>, %arg3: memref<1x32x128xf32, #tpu.memory_space<vmem>>, %arg4: memref<1x32x128xf32, #tpu.memory_space<vmem>>, %arg5: memref<1x96x1xf32, #tpu.memory_space<vmem>>, %arg6: memref<3x32x96xbf16, #tpu.memory_space<vmem>>, %arg7: memref<3x32x48xbf16, #tpu.memory_space<vmem>>, %arg8: memref<3x32x1xf32, #tpu.memory_space<vmem>>, %arg9: memref<1x32x128xf32, #tpu.memory_space<vmem>>) attributes {dimension_semantics = [#tpu.dimension_semantics<parallel>, #tpu.dimension_semantics<parallel>], iteration_bounds = array<i64: 2, 3>, scalar_prefetch = 0 : i64, scratch_operands = 0 : i64, tpu.core_type = #tpu.core_type<tc>, window_params = [{transform_indices = @transform_0, window_bounds = array<i64: 1, 32, 128>}, {transform_indices = @transform_1, window_bounds = array<i64: 1, 32, 128>}, {transform_indices = @transform_2, window_bounds = array<i64: 1, 32, 128>}, {transform_indices = @transform_3, window_bounds = array<i64: 1, 96, 1>}, {pipeline_mode = #tpu.pipeline_mode<synchronous>, transform_indices = @transform_4, window_bounds = array<i64: 3, 32, 96>}, {pipeline_mode = #tpu.pipeline_mode<synchronous>, transform_indices = @transform_5, window_bounds = array<i64: 3, 32, 48>}, {pipeline_mode = #tpu.pipeline_mode<synchronous>, transform_indices = @transform_6, window_bounds = array<i64: 3, 32, 1>}, {transform_indices = @transform_7, window_bounds = array<i64: 1, 32, 128>}]} {
    %c0 = arith.constant 0 : index
    %c0_0 = arith.constant 0 : index
    %c0_1 = arith.constant 0 : index
    %0 = vector.load %arg2[%c0, %c0_0, %c0_1] : memref<1x32x128xf32, #tpu.memory_space<vmem>>, vector<1x32x128xf32>
    %1 = vector.shape_cast %0 : vector<1x32x128xf32> to vector<32x128xf32>
    %2 = vector.extract_strided_slice %1 {offsets = [0, 116], sizes = [32, 12], strides = [1, 1]} : vector<32x128xf32> to vector<32x12xf32>
    %c0_2 = arith.constant 0 : index
    %c0_3 = arith.constant 0 : index
    %c0_4 = arith.constant 0 : index
    %3 = vector.load %arg4[%c0_2, %c0_3, %c0_4] : memref<1x32x128xf32, #tpu.memory_space<vmem>>, vector<1x32x128xf32>
    %4 = vector.shape_cast %3 : vector<1x32x128xf32> to vector<32x128xf32>
    %5 = vector.extract_strided_slice %4 {offsets = [0, 0], sizes = [32, 12], strides = [1, 1]} : vector<32x128xf32> to vector<32x12xf32>
    %c0_5 = arith.constant 0 : index
    %c0_6 = arith.constant 0 : index
    %c0_7 = arith.constant 0 : index
    %6 = vector.load %arg3[%c0_5, %c0_6, %c0_7] : memref<1x32x128xf32, #tpu.memory_space<vmem>>, vector<1x32x128xf32>
    %7 = vector.shape_cast %6 : vector<1x32x128xf32> to vector<32x128xf32>
    %8 = tpu.concatenate %2, %7, %5 in 1 : vector<32x12xf32>, vector<32x128xf32>, vector<32x12xf32> -> vector<32x152xf32>
    %c128_i32 = arith.constant 128 : i32
    %9 = arith.muli %arg1, %c128_i32 : i32
    %c12_i32 = arith.constant 12 : i32
    %10 = arith.subi %9, %c12_i32 : i32
    %11 = tpu.iota {dimensions = array<i32: 1>} : vector<1x152xi32>
    %12 = vector.broadcast %10 : i32 to vector<1x152xi32>
    %13 = arith.addi %12, %11 : vector<1x152xi32>
    %c0_i32 = arith.constant 0 : i32
    %14 = vector.broadcast %c0_i32 : i32 to vector<1x152xi32>
    %15 = arith.cmpi sge, %13, %14 : vector<1x152xi32>
    %c300_i32 = arith.constant 300 : i32
    %16 = vector.broadcast %c300_i32 : i32 to vector<1x152xi32>
    %17 = arith.cmpi slt, %13, %16 : vector<1x152xi32>
    %18 = arith.andi %15, %17 : vector<1x152xi1>
    %c0_8 = arith.constant 0 : index
    %c0_9 = arith.constant 0 : index
    %c0_10 = arith.constant 0 : index
    %19 = vector.load %arg5[%c0_8, %c0_9, %c0_10] : memref<1x96x1xf32, #tpu.memory_space<vmem>>, vector<1x96x1xf32>
    %20 = vector.shape_cast %19 : vector<1x96x1xf32> to vector<96x1xf32>
    %cst = arith.constant 1.000000e-01 : f32
    %cst_11 = arith.constant 0.000000e+00 : f32
    %21 = vector.broadcast %cst_11 : f32 to vector<32x152xf32>
    %22 = arith.cmpf oge, %8, %21 : vector<32x152xf32>
    %23 = vector.broadcast %cst : f32 to vector<32x152xf32>
    %24 = arith.mulf %23, %8 : vector<32x152xf32>
    %25 = arith.select %22, %8, %24 : vector<32x152xi1>, vector<32x152xf32>
    %cst_12 = arith.constant 0.000000e+00 : f32
    %26 = vector.shape_cast %18 : vector<1x152xi1> to vector<1x152xi1>
    %27 = vector.broadcast %26 : vector<1x152xi1> to vector<32x152xi1>
    %28 = vector.broadcast %cst_12 : f32 to vector<32x152xf32>
    %29 = arith.select %27, %25, %28 : vector<32x152xi1>, vector<32x152xf32>
    %c0_13 = arith.constant 0 : index
    %c0_14 = arith.constant 0 : index
    %c0_15 = arith.constant 0 : index
    %30 = vector.load %arg6[%c0_13, %c0_14, %c0_15] : memref<3x32x96xbf16, #tpu.memory_space<vmem>>, vector<1x32x96xbf16>
    %31 = vector.shape_cast %30 : vector<1x32x96xbf16> to vector<32x96xbf16>
    %32 = arith.truncf %29 : vector<32x152xf32> to vector<32x152xbf16>
    %33 = vector.extract_strided_slice %32 {offsets = [0, 0], sizes = [32, 150], strides = [1, 1]} : vector<32x152xbf16> to vector<32x150xbf16>
    %34 = vector.extract_strided_slice %32 {offsets = [0, 1], sizes = [32, 150], strides = [1, 1]} : vector<32x152xbf16> to vector<32x150xbf16>
    %35 = vector.extract_strided_slice %32 {offsets = [0, 2], sizes = [32, 150], strides = [1, 1]} : vector<32x152xbf16> to vector<32x150xbf16>
    %36 = tpu.concatenate %33, %34, %35 in 0 : vector<32x150xbf16>, vector<32x150xbf16>, vector<32x150xbf16> -> vector<96x150xbf16>
    %cst_16 = arith.constant dense<0.000000e+00> : vector<32x150xf32>
    %37 = tpu.matmul %31, %36, %cst_16 {dimension_numbers = #tpu.dot_dimension_numbers<[1], [0], [0], [1], [0, 0, 1, 1], [], []>} : vector<32x96xbf16>, vector<96x150xbf16>, vector<32x150xf32> -> vector<32x150xf32>
    %38 = vector.extract_strided_slice %20 {offsets = [0, 0], sizes = [32, 1], strides = [1, 1]} : vector<96x1xf32> to vector<32x1xf32>
    %39 = vector.broadcast %38 : vector<32x1xf32> to vector<32x150xf32>
    %40 = arith.addf %37, %39 : vector<32x150xf32>
    %41 = vector.extract_strided_slice %40 {offsets = [0, 0], sizes = [16, 150], strides = [1, 1]} : vector<32x150xf32> to vector<16x150xf32>
    %42 = math.tanh %41 : vector<16x150xf32>
    %43 = vector.extract_strided_slice %40 {offsets = [16, 0], sizes = [16, 150], strides = [1, 1]} : vector<32x150xf32> to vector<16x150xf32>
    %44 = arith.negf %43 : vector<16x150xf32>
    %45 = math.exp %44 : vector<16x150xf32>
    %cst_17 = arith.constant 1.000000e+00 : f32
    %46 = vector.broadcast %cst_17 : f32 to vector<16x150xf32>
    %47 = arith.addf %46, %45 : vector<16x150xf32>
    %48 = arith.divf %46, %47 : vector<16x150xf32>
    %49 = arith.mulf %42, %48 : vector<16x150xf32>
    %50 = vector.extract_strided_slice %18 {offsets = [0, 1], sizes = [1, 150], strides = [1, 1]} : vector<1x152xi1> to vector<1x150xi1>
    %cst_18 = arith.constant 0.000000e+00 : f32
    %51 = vector.shape_cast %50 : vector<1x150xi1> to vector<1x150xi1>
    %52 = vector.broadcast %51 : vector<1x150xi1> to vector<16x150xi1>
    %53 = vector.broadcast %cst_18 : f32 to vector<16x150xf32>
    %54 = arith.select %52, %49, %53 : vector<16x150xi1>, vector<16x150xf32>
    %c0_19 = arith.constant 0 : index
    %c0_20 = arith.constant 0 : index
    %c0_21 = arith.constant 0 : index
    %55 = vector.load %arg7[%c0_19, %c0_20, %c0_21] : memref<3x32x48xbf16, #tpu.memory_space<vmem>>, vector<1x32x48xbf16>
    %56 = vector.shape_cast %55 : vector<1x32x48xbf16> to vector<32x48xbf16>
    %57 = arith.truncf %54 : vector<16x150xf32> to vector<16x150xbf16>
    %58 = vector.extract_strided_slice %57 {offsets = [0, 0], sizes = [16, 148], strides = [1, 1]} : vector<16x150xbf16> to vector<16x148xbf16>
    %59 = vector.extract_strided_slice %57 {offsets = [0, 1], sizes = [16, 148], strides = [1, 1]} : vector<16x150xbf16> to vector<16x148xbf16>
    %60 = vector.extract_strided_slice %57 {offsets = [0, 2], sizes = [16, 148], strides = [1, 1]} : vector<16x150xbf16> to vector<16x148xbf16>
    %61 = tpu.concatenate %58, %59, %60 in 0 : vector<16x148xbf16>, vector<16x148xbf16>, vector<16x148xbf16> -> vector<48x148xbf16>
    %cst_22 = arith.constant dense<0.000000e+00> : vector<32x148xf32>
    %62 = tpu.matmul %56, %61, %cst_22 {dimension_numbers = #tpu.dot_dimension_numbers<[1], [0], [0], [1], [0, 0, 1, 1], [], []>} : vector<32x48xbf16>, vector<48x148xbf16>, vector<32x148xf32> -> vector<32x148xf32>
    %c0_23 = arith.constant 0 : index
    %c0_24 = arith.constant 0 : index
    %c0_25 = arith.constant 0 : index
    %63 = vector.load %arg8[%c0_23, %c0_24, %c0_25] : memref<3x32x1xf32, #tpu.memory_space<vmem>>, vector<1x32x1xf32>
    %64 = vector.shape_cast %63 : vector<1x32x1xf32> to vector<32x1xf32>
    %65 = vector.broadcast %64 : vector<32x1xf32> to vector<32x148xf32>
    %66 = arith.addf %62, %65 : vector<32x148xf32>
    %67 = vector.extract_strided_slice %8 {offsets = [0, 2], sizes = [32, 148], strides = [1, 1]} : vector<32x152xf32> to vector<32x148xf32>
    %68 = arith.addf %66, %67 : vector<32x148xf32>
    %69 = vector.extract_strided_slice %18 {offsets = [0, 2], sizes = [1, 148], strides = [1, 1]} : vector<1x152xi1> to vector<1x148xi1>
    %cst_26 = arith.constant 1.000000e-01 : f32
    %cst_27 = arith.constant 0.000000e+00 : f32
    %70 = vector.broadcast %cst_27 : f32 to vector<32x148xf32>
    %71 = arith.cmpf oge, %68, %70 : vector<32x148xf32>
    %72 = vector.broadcast %cst_26 : f32 to vector<32x148xf32>
    %73 = arith.mulf %72, %68 : vector<32x148xf32>
    %74 = arith.select %71, %68, %73 : vector<32x148xi1>, vector<32x148xf32>
    %cst_28 = arith.constant 0.000000e+00 : f32
    %75 = vector.shape_cast %69 : vector<1x148xi1> to vector<1x148xi1>
    %76 = vector.broadcast %75 : vector<1x148xi1> to vector<32x148xi1>
    %77 = vector.broadcast %cst_28 : f32 to vector<32x148xf32>
    %78 = arith.select %76, %74, %77 : vector<32x148xi1>, vector<32x148xf32>
    %c1 = arith.constant 1 : index
    %c0_29 = arith.constant 0 : index
    %c0_30 = arith.constant 0 : index
    %79 = vector.load %arg6[%c1, %c0_29, %c0_30] : memref<3x32x96xbf16, #tpu.memory_space<vmem>>, vector<1x32x96xbf16>
    %80 = vector.shape_cast %79 : vector<1x32x96xbf16> to vector<32x96xbf16>
    %81 = arith.truncf %78 : vector<32x148xf32> to vector<32x148xbf16>
    %82 = vector.extract_strided_slice %81 {offsets = [0, 0], sizes = [32, 142], strides = [1, 1]} : vector<32x148xbf16> to vector<32x142xbf16>
    %83 = vector.extract_strided_slice %81 {offsets = [0, 3], sizes = [32, 142], strides = [1, 1]} : vector<32x148xbf16> to vector<32x142xbf16>
    %84 = vector.extract_strided_slice %81 {offsets = [0, 6], sizes = [32, 142], strides = [1, 1]} : vector<32x148xbf16> to vector<32x142xbf16>
    %85 = tpu.concatenate %82, %83, %84 in 0 : vector<32x142xbf16>, vector<32x142xbf16>, vector<32x142xbf16> -> vector<96x142xbf16>
    %cst_31 = arith.constant dense<0.000000e+00> : vector<32x142xf32>
    %86 = tpu.matmul %80, %85, %cst_31 {dimension_numbers = #tpu.dot_dimension_numbers<[1], [0], [0], [1], [0, 0, 1, 1], [], []>} : vector<32x96xbf16>, vector<96x142xbf16>, vector<32x142xf32> -> vector<32x142xf32>
    %87 = vector.extract_strided_slice %20 {offsets = [32, 0], sizes = [32, 1], strides = [1, 1]} : vector<96x1xf32> to vector<32x1xf32>
    %88 = vector.broadcast %87 : vector<32x1xf32> to vector<32x142xf32>
    %89 = arith.addf %86, %88 : vector<32x142xf32>
    %90 = vector.extract_strided_slice %89 {offsets = [0, 0], sizes = [16, 142], strides = [1, 1]} : vector<32x142xf32> to vector<16x142xf32>
    %91 = math.tanh %90 : vector<16x142xf32>
    %92 = vector.extract_strided_slice %89 {offsets = [16, 0], sizes = [16, 142], strides = [1, 1]} : vector<32x142xf32> to vector<16x142xf32>
    %93 = arith.negf %92 : vector<16x142xf32>
    %94 = math.exp %93 : vector<16x142xf32>
    %cst_32 = arith.constant 1.000000e+00 : f32
    %95 = vector.broadcast %cst_32 : f32 to vector<16x142xf32>
    %96 = arith.addf %95, %94 : vector<16x142xf32>
    %97 = arith.divf %95, %96 : vector<16x142xf32>
    %98 = arith.mulf %91, %97 : vector<16x142xf32>
    %99 = vector.extract_strided_slice %18 {offsets = [0, 5], sizes = [1, 142], strides = [1, 1]} : vector<1x152xi1> to vector<1x142xi1>
    %cst_33 = arith.constant 0.000000e+00 : f32
    %100 = vector.shape_cast %99 : vector<1x142xi1> to vector<1x142xi1>
    %101 = vector.broadcast %100 : vector<1x142xi1> to vector<16x142xi1>
    %102 = vector.broadcast %cst_33 : f32 to vector<16x142xf32>
    %103 = arith.select %101, %98, %102 : vector<16x142xi1>, vector<16x142xf32>
    %c1_34 = arith.constant 1 : index
    %c0_35 = arith.constant 0 : index
    %c0_36 = arith.constant 0 : index
    %104 = vector.load %arg7[%c1_34, %c0_35, %c0_36] : memref<3x32x48xbf16, #tpu.memory_space<vmem>>, vector<1x32x48xbf16>
    %105 = vector.shape_cast %104 : vector<1x32x48xbf16> to vector<32x48xbf16>
    %106 = arith.truncf %103 : vector<16x142xf32> to vector<16x142xbf16>
    %107 = vector.extract_strided_slice %106 {offsets = [0, 0], sizes = [16, 140], strides = [1, 1]} : vector<16x142xbf16> to vector<16x140xbf16>
    %108 = vector.extract_strided_slice %106 {offsets = [0, 1], sizes = [16, 140], strides = [1, 1]} : vector<16x142xbf16> to vector<16x140xbf16>
    %109 = vector.extract_strided_slice %106 {offsets = [0, 2], sizes = [16, 140], strides = [1, 1]} : vector<16x142xbf16> to vector<16x140xbf16>
    %110 = tpu.concatenate %107, %108, %109 in 0 : vector<16x140xbf16>, vector<16x140xbf16>, vector<16x140xbf16> -> vector<48x140xbf16>
    %cst_37 = arith.constant dense<0.000000e+00> : vector<32x140xf32>
    %111 = tpu.matmul %105, %110, %cst_37 {dimension_numbers = #tpu.dot_dimension_numbers<[1], [0], [0], [1], [0, 0, 1, 1], [], []>} : vector<32x48xbf16>, vector<48x140xbf16>, vector<32x140xf32> -> vector<32x140xf32>
    %c1_38 = arith.constant 1 : index
    %c0_39 = arith.constant 0 : index
    %c0_40 = arith.constant 0 : index
    %112 = vector.load %arg8[%c1_38, %c0_39, %c0_40] : memref<3x32x1xf32, #tpu.memory_space<vmem>>, vector<1x32x1xf32>
    %113 = vector.shape_cast %112 : vector<1x32x1xf32> to vector<32x1xf32>
    %114 = vector.broadcast %113 : vector<32x1xf32> to vector<32x140xf32>
    %115 = arith.addf %111, %114 : vector<32x140xf32>
    %116 = vector.extract_strided_slice %68 {offsets = [0, 4], sizes = [32, 140], strides = [1, 1]} : vector<32x148xf32> to vector<32x140xf32>
    %117 = arith.addf %115, %116 : vector<32x140xf32>
    %118 = vector.extract_strided_slice %18 {offsets = [0, 6], sizes = [1, 140], strides = [1, 1]} : vector<1x152xi1> to vector<1x140xi1>
    %cst_41 = arith.constant 1.000000e-01 : f32
    %cst_42 = arith.constant 0.000000e+00 : f32
    %119 = vector.broadcast %cst_42 : f32 to vector<32x140xf32>
    %120 = arith.cmpf oge, %117, %119 : vector<32x140xf32>
    %121 = vector.broadcast %cst_41 : f32 to vector<32x140xf32>
    %122 = arith.mulf %121, %117 : vector<32x140xf32>
    %123 = arith.select %120, %117, %122 : vector<32x140xi1>, vector<32x140xf32>
    %cst_43 = arith.constant 0.000000e+00 : f32
    %124 = vector.shape_cast %118 : vector<1x140xi1> to vector<1x140xi1>
    %125 = vector.broadcast %124 : vector<1x140xi1> to vector<32x140xi1>
    %126 = vector.broadcast %cst_43 : f32 to vector<32x140xf32>
    %127 = arith.select %125, %123, %126 : vector<32x140xi1>, vector<32x140xf32>
    %c2 = arith.constant 2 : index
    %c0_44 = arith.constant 0 : index
    %c0_45 = arith.constant 0 : index
    %128 = vector.load %arg6[%c2, %c0_44, %c0_45] : memref<3x32x96xbf16, #tpu.memory_space<vmem>>, vector<1x32x96xbf16>
    %129 = vector.shape_cast %128 : vector<1x32x96xbf16> to vector<32x96xbf16>
    %130 = arith.truncf %127 : vector<32x140xf32> to vector<32x140xbf16>
    %131 = vector.extract_strided_slice %130 {offsets = [0, 0], sizes = [32, 130], strides = [1, 1]} : vector<32x140xbf16> to vector<32x130xbf16>
    %132 = vector.extract_strided_slice %130 {offsets = [0, 5], sizes = [32, 130], strides = [1, 1]} : vector<32x140xbf16> to vector<32x130xbf16>
    %133 = vector.extract_strided_slice %130 {offsets = [0, 10], sizes = [32, 130], strides = [1, 1]} : vector<32x140xbf16> to vector<32x130xbf16>
    %134 = tpu.concatenate %131, %132, %133 in 0 : vector<32x130xbf16>, vector<32x130xbf16>, vector<32x130xbf16> -> vector<96x130xbf16>
    %cst_46 = arith.constant dense<0.000000e+00> : vector<32x130xf32>
    %135 = tpu.matmul %129, %134, %cst_46 {dimension_numbers = #tpu.dot_dimension_numbers<[1], [0], [0], [1], [0, 0, 1, 1], [], []>} : vector<32x96xbf16>, vector<96x130xbf16>, vector<32x130xf32> -> vector<32x130xf32>
    %136 = vector.extract_strided_slice %20 {offsets = [64, 0], sizes = [32, 1], strides = [1, 1]} : vector<96x1xf32> to vector<32x1xf32>
    %137 = vector.broadcast %136 : vector<32x1xf32> to vector<32x130xf32>
    %138 = arith.addf %135, %137 : vector<32x130xf32>
    %139 = vector.extract_strided_slice %138 {offsets = [0, 0], sizes = [16, 130], strides = [1, 1]} : vector<32x130xf32> to vector<16x130xf32>
    %140 = math.tanh %139 : vector<16x130xf32>
    %141 = vector.extract_strided_slice %138 {offsets = [16, 0], sizes = [16, 130], strides = [1, 1]} : vector<32x130xf32> to vector<16x130xf32>
    %142 = arith.negf %141 : vector<16x130xf32>
    %143 = math.exp %142 : vector<16x130xf32>
    %cst_47 = arith.constant 1.000000e+00 : f32
    %144 = vector.broadcast %cst_47 : f32 to vector<16x130xf32>
    %145 = arith.addf %144, %143 : vector<16x130xf32>
    %146 = arith.divf %144, %145 : vector<16x130xf32>
    %147 = arith.mulf %140, %146 : vector<16x130xf32>
    %148 = vector.extract_strided_slice %18 {offsets = [0, 11], sizes = [1, 130], strides = [1, 1]} : vector<1x152xi1> to vector<1x130xi1>
    %cst_48 = arith.constant 0.000000e+00 : f32
    %149 = vector.shape_cast %148 : vector<1x130xi1> to vector<1x130xi1>
    %150 = vector.broadcast %149 : vector<1x130xi1> to vector<16x130xi1>
    %151 = vector.broadcast %cst_48 : f32 to vector<16x130xf32>
    %152 = arith.select %150, %147, %151 : vector<16x130xi1>, vector<16x130xf32>
    %c2_49 = arith.constant 2 : index
    %c0_50 = arith.constant 0 : index
    %c0_51 = arith.constant 0 : index
    %153 = vector.load %arg7[%c2_49, %c0_50, %c0_51] : memref<3x32x48xbf16, #tpu.memory_space<vmem>>, vector<1x32x48xbf16>
    %154 = vector.shape_cast %153 : vector<1x32x48xbf16> to vector<32x48xbf16>
    %155 = arith.truncf %152 : vector<16x130xf32> to vector<16x130xbf16>
    %156 = vector.extract_strided_slice %155 {offsets = [0, 0], sizes = [16, 128], strides = [1, 1]} : vector<16x130xbf16> to vector<16x128xbf16>
    %157 = vector.extract_strided_slice %155 {offsets = [0, 1], sizes = [16, 128], strides = [1, 1]} : vector<16x130xbf16> to vector<16x128xbf16>
    %158 = vector.extract_strided_slice %155 {offsets = [0, 2], sizes = [16, 128], strides = [1, 1]} : vector<16x130xbf16> to vector<16x128xbf16>
    %159 = tpu.concatenate %156, %157, %158 in 0 : vector<16x128xbf16>, vector<16x128xbf16>, vector<16x128xbf16> -> vector<48x128xbf16>
    %cst_52 = arith.constant dense<0.000000e+00> : vector<32x128xf32>
    %160 = tpu.matmul %154, %159, %cst_52 {dimension_numbers = #tpu.dot_dimension_numbers<[1], [0], [0], [1], [0, 0, 1, 1], [], []>} : vector<32x48xbf16>, vector<48x128xbf16>, vector<32x128xf32> -> vector<32x128xf32>
    %c2_53 = arith.constant 2 : index
    %c0_54 = arith.constant 0 : index
    %c0_55 = arith.constant 0 : index
    %161 = vector.load %arg8[%c2_53, %c0_54, %c0_55] : memref<3x32x1xf32, #tpu.memory_space<vmem>>, vector<1x32x1xf32>
    %162 = vector.shape_cast %161 : vector<1x32x1xf32> to vector<32x1xf32>
    %163 = vector.broadcast %162 : vector<32x1xf32> to vector<32x128xf32>
    %164 = arith.addf %160, %163 : vector<32x128xf32>
    %165 = vector.extract_strided_slice %117 {offsets = [0, 6], sizes = [32, 128], strides = [1, 1]} : vector<32x140xf32> to vector<32x128xf32>
    %166 = arith.addf %164, %165 : vector<32x128xf32>
    %c0_56 = arith.constant 0 : index
    %c0_57 = arith.constant 0 : index
    %c0_58 = arith.constant 0 : index
    %167 = vector.load %arg9[%c0_56, %c0_57, %c0_58] : memref<1x32x128xf32, #tpu.memory_space<vmem>>, vector<1x32x128xf32>
    %168 = vector.shape_cast %167 : vector<1x32x128xf32> to vector<32x128xf32>
    %169 = vector.shape_cast %166 : vector<32x128xf32> to vector<1x32x128xf32>
    tpu.vector_store %arg9[%c0_56, %c0_57, %c0_58], %169 {strides = array<i32>} : memref<1x32x128xf32, #tpu.memory_space<vmem>>, vector<1x32x128xf32>,
    return
  }
  func.func @transform_0(%arg0: i32, %arg1: i32) -> (i32, i32, i32) {
    %c1_i32 = arith.constant 1 : i32
    %0 = arith.muli %arg1, %c1_i32 : i32
    %c1_i32_0 = arith.constant 1 : i32
    %1 = arith.subi %0, %c1_i32_0 : i32
    %c0_i32 = arith.constant 0 : i32
    %2 = arith.maxsi %1, %c0_i32 : i32
    %c0_i32_1 = arith.constant 0 : i32
    %c0_i32_2 = arith.constant 0 : i32
    return %arg0, %c0_i32_1, %2 : i32, i32, i32
  }
  func.func @transform_1(%arg0: i32, %arg1: i32) -> (i32, i32, i32) {
    %c0_i32 = arith.constant 0 : i32
    %c0_i32_0 = arith.constant 0 : i32
    return %arg0, %c0_i32, %arg1 : i32, i32, i32
  }
  func.func @transform_2(%arg0: i32, %arg1: i32) -> (i32, i32, i32) {
    %c1_i32 = arith.constant 1 : i32
    %0 = arith.muli %arg1, %c1_i32 : i32
    %c1_i32_0 = arith.constant 1 : i32
    %1 = arith.addi %0, %c1_i32_0 : i32
    %c2_i32 = arith.constant 2 : i32
    %2 = arith.minsi %1, %c2_i32 : i32
    %c0_i32 = arith.constant 0 : i32
    %c0_i32_1 = arith.constant 0 : i32
    return %arg0, %c0_i32, %2 : i32, i32, i32
  }
  func.func @transform_3(%arg0: i32, %arg1: i32) -> (i32, i32, i32) {
    %c0_i32 = arith.constant 0 : i32
    %c0_i32_0 = arith.constant 0 : i32
    %c0_i32_1 = arith.constant 0 : i32
    return %arg0, %c0_i32, %c0_i32_0 : i32, i32, i32
  }
  func.func @transform_4(%arg0: i32, %arg1: i32) -> (i32, i32, i32) {
    %c0_i32 = arith.constant 0 : i32
    %c0_i32_0 = arith.constant 0 : i32
    %c0_i32_1 = arith.constant 0 : i32
    %c0_i32_2 = arith.constant 0 : i32
    return %c0_i32, %c0_i32_0, %c0_i32_1 : i32, i32, i32
  }
  func.func @transform_5(%arg0: i32, %arg1: i32) -> (i32, i32, i32) {
    %c0_i32 = arith.constant 0 : i32
    %c0_i32_0 = arith.constant 0 : i32
    %c0_i32_1 = arith.constant 0 : i32
    %c0_i32_2 = arith.constant 0 : i32
    return %c0_i32, %c0_i32_0, %c0_i32_1 : i32, i32, i32
  }
  func.func @transform_6(%arg0: i32, %arg1: i32) -> (i32, i32, i32) {
    %c0_i32 = arith.constant 0 : i32
    %c0_i32_0 = arith.constant 0 : i32
    %c0_i32_1 = arith.constant 0 : i32
    %c0_i32_2 = arith.constant 0 : i32
    return %c0_i32, %c0_i32_0, %c0_i32_1 : i32, i32, i32
  }
  func.func @transform_7(%arg0: i32, %arg1: i32) -> (i32, i32, i32) {
    %c0_i32 = arith.constant 0 : i32
    %c0_i32_0 = arith.constant 0 : i32
    return %arg0, %c0_i32, %arg1 : i32, i32, i32
  }
}

</mosaic_0001>

<llo_original>
// kernel: tpu_custom_call.1
$region0: #{tpu_custom_call.1}
  #allocation0 [shape = 'u32[]', space=smem, size = 0x4, offset = 0x4, fixed_abs, tag = 'smem constant byte address 0x4 - core index']
  #allocation1 [shape = 'u32[144,128]{1,0:T(1,128)}', space=vmem, size = 0x12000, scoped, tag = 'internal scratch']
  %s0 = inlined_call_operand.vmem [shape: f32[2,32,384], index: 0, kind: input, shape index: {}]
  %s1 = inlined_call_operand.hbm [shape: f32[2,32,384], index: 1, kind: input, shape index: {}]
  %s2 = inlined_call_operand.hbm [shape: f32[2,32,384], index: 2, kind: input, shape index: {}]
  %s3 = inlined_call_operand.vmem [shape: f32[2,96,1], index: 3, kind: input, shape index: {}]
  %s4 = inlined_call_operand.vmem [shape: bf16[3,32,96], index: 4, kind: input, shape index: {}]
  %s5 = inlined_call_operand.vmem [shape: bf16[3,32,48], index: 5, kind: input, shape index: {}]
  %s6 = inlined_call_operand.vmem [shape: f32[3,32,1], index: 6, kind: input, shape index: {}]
  %s7 = inlined_call_operand.hbm [shape: f32[2,32,384], index: 7, kind: output, shape index: {}]
  %s8 = sld [smem:[#allocation0]]
  $region107: #{tpu_custom_call.1} parent=0
    _
  %s10 = ssub.s32 1, %s8
  %s11 = scalar_select 0, %s10, %s8
  $region1: #{tpu_custom_call.1} parent=0
    #allocation2 [shape = 'u8[32768]{0}', space=vmem, size = 0x8000, scoped, tag = 'input window, operand 0']
    #allocation3 [shape = 'u8[32768]{0}', space=vmem, size = 0x8000, scoped, tag = 'input window, operand 1']
    #allocation4 [shape = 's32[2]{0}', space=sflag, size = 0x8, scoped, tag = 'scoped memory for tpu_custom_call.1']
    #allocation5 [shape = 's32[2]{0}', space=sflag, size = 0x8, scoped, tag = 'scoped memory for tpu_custom_call.1']
    #allocation6 [shape = 'u8[32768]{0}', space=vmem, size = 0x8000, scoped, tag = 'input window, operand 2']
    #allocation7 [shape = 's32[2]{0}', space=sflag, size = 0x8, scoped, tag = 'scoped memory for tpu_custom_call.1']
    #allocation8 [shape = 'u8[32768]{0}', space=vmem, size = 0x8000, scoped, tag = 'output window, operand 0']
    %12 = vsyncpa [#allocation4], 0
    %s13 = scalar_lea.sflag [#allocation4], 1
    %14 = vsyncpa %s13, 0
    %15 = vsyncpa [#allocation7], 0
    %s16 = scalar_lea.sflag [#allocation7], 1
    %17 = vsyncpa %s16, 0
    %18 = vsyncpa [#allocation5], 0
    %s19 = scalar_lea.sflag [#allocation5], 1
    %20 = vsyncpa %s19, 0
    loop: start=0, step=1, limit=8
    $region2: #{tpu_custom_call.1} parent=1 // loop_pre_header
      _
    $region3: #{tpu_custom_call.1} parent=1 // loop_header
      %s22 = sphi 0, %s26
      %p23 = scmp.ge.s32.totalorder %s22, 8
      %s29 = sphi 0, %s41
      %s30 = sphi 0, %s37
      %s31 = sphi 0, %s29
      %s32 = sphi 0, %s30
      %s33 = sphi 0, %s31
      %s34 = sphi 0, %s32
      %s52 = sphi 0, %s54
      %s55 = sphi 0, %s52
      %s56 = sphi 0, %s55
      %s72 = sphi 0, %s56
      %s80 = sphi 0, %s82
      %s83 = sphi 0, %s80
      %s84 = sphi 0, %s83
      %s100 = sphi 0, %s84
      %s114 = sphi 0, %s116
      %s117 = sphi 0, %s114
      %s118 = sphi 0, %s117
      %s134 = sphi 0, %s118
      %s140 = sphi 0, %s142
      %s143 = sphi 0, %s140
      %s144 = sphi 0, %s143
      %s160 = sphi 0, %s144
      %s164 = sphi 0, %s164
      %s166 = sphi 0, %s164
      %s167 = sphi 0, %s166
      %s181 = sphi 0, %s167
      %s185 = sphi 0, %s185
      %s187 = sphi 0, %s185
      %s188 = sphi 0, %s187
      %s202 = sphi 0, %s188
      %s206 = sphi 0, %s206
      %s208 = sphi 0, %s206
      %s209 = sphi 0, %s208
      %s223 = sphi 0, %s209
      %s231 = sphi 0, %s233
      %s234 = sphi 0, %s231
      %s235 = sphi 0, %s234
      %s251 = sphi 0, %s235
    $region4: #{tpu_custom_call.1} parent=1 // loop_header_branch
      %25 = sbr.rel (%p23) target = $region8
    $region5: #{tpu_custom_call.1} parent=1 // loop_body
      %s27 = ssub.s32 %s22, 1
      %s28 = ssub.s32 %s22, 2
      %s35 = sadd.s32 1, %s30
      %p36 = scmp.ge.s32.totalorder %s35, 3
      %s37 = scalar_select %p36, 0, %s35
      %s38 = sadd.s32 1, %s29
      %s39 = scalar_select %p36, %s38, %s29
      %p40 = scmp.ge.s32.totalorder %s39, 2
      %s41 = scalar_select %p40, 0, %s39
      %s42 = ssub.s32 %s30, 1
      %p43 = scmp.gt.s32.totalorder %s42, 0
      %s44 = scalar_select %p43, %s42, 0
      %s45 = ssub.s32 %s37, 1
      %p46 = scmp.gt.s32.totalorder %s45, 0
      %s47 = scalar_select %p46, %s45, 0
      %s48 = ssub.s32 %s29, %s41
      %s49 = ssub.s32 %s44, %s47
      %s50 = sor.u32 %s48, %s49
      %p51 = scmp.eq.s32.totalorder %s50, 0
      %s53 = sadd.s32 %s52, 1
      %s54 = scalar_select %p51, %s52, %s53
      %p57 = pneg %p51
      %p58 = scmp.eq.s32.totalorder %s22, 5
      %p59 = por %p57, %p58
      %p60 = scmp.ne.s32.totalorder %s52, %s55
      %p61 = scmp.eq.s32.totalorder %s22, 0
      %p62 = por %p60, %p61
      %p63 = scmp.ne.s32.totalorder %s52, %s55
      %p64 = scmp.eq.s32.totalorder %s27, 5
      %p65 = por %p63, %p64
      %p66 = scmp.ne.s32.totalorder %s55, %s56
      %p67 = scmp.eq.s32.totalorder %s27, 0
      %p68 = por %p66, %p67
      %p69 = scmp.ne.s32.totalorder %s55, %s56
      %p70 = scmp.eq.s32.totalorder %s28, 5
      %p71 = por %p69, %p70
      %p73 = scmp.ne.s32.totalorder %s56, %s72
      %p74 = scmp.eq.s32.totalorder %s28, 0
      %p75 = por %p73, %p74
      %s76 = ssub.s32 %s29, %s41
      %s77 = ssub.s32 %s30, %s37
      %s78 = sor.u32 %s76, %s77
      %p79 = scmp.eq.s32.totalorder %s78, 0
      %s81 = sadd.s32 %s80, 1
      %s82 = scalar_select %p79, %s80, %s81
      %p85 = pneg %p79
      %p86 = scmp.eq.s32.totalorder %s22, 5
      %p87 = por %p85, %p86
      %p88 = scmp.ne.s32.totalorder %s80, %s83
      %p89 = scmp.eq.s32.totalorder %s22, 0
      %p90 = por %p88, %p89
      %p91 = scmp.ne.s32.totalorder %s80, %s83
      %p92 = scmp.eq.s32.totalorder %s27, 5
      %p93 = por %p91, %p92
      %p94 = scmp.ne.s32.totalorder %s83, %s84
      %p95 = scmp.eq.s32.totalorder %s27, 0
      %p96 = por %p94, %p95
      %p97 = scmp.ne.s32.totalorder %s83, %s84
      %p98 = scmp.eq.s32.totalorder %s28, 5
      %p99 = por %p97, %p98
      %p101 = scmp.ne.s32.totalorder %s84, %s100
      %p102 = scmp.eq.s32.totalorder %s28, 0
      %p103 = por %p101, %p102
      %s104 = sadd.s32 %s30, 1
      %p105 = scmp.lt.s32.totalorder %s104, 2
      %s106 = scalar_select %p105, %s104, 2
      %s107 = sadd.s32 %s37, 1
      %p108 = scmp.lt.s32.totalorder %s107, 2
      %s109 = scalar_select %p108, %s107, 2
      %s110 = ssub.s32 %s29, %s41
      %s111 = ssub.s32 %s106, %s109
      %s112 = sor.u32 %s110, %s111
      %p113 = scmp.eq.s32.totalorder %s112, 0
      %s115 = sadd.s32 %s114, 1
      %s116 = scalar_select %p113, %s114, %s115
      %p119 = pneg %p113
      %p120 = scmp.eq.s32.totalorder %s22, 5
      %p121 = por %p119, %p120
      %p122 = scmp.ne.s32.totalorder %s114, %s117
      %p123 = scmp.eq.s32.totalorder %s22, 0
      %p124 = por %p122, %p123
      %p125 = scmp.ne.s32.totalorder %s114, %s117
      %p126 = scmp.eq.s32.totalorder %s27, 5
      %p127 = por %p125, %p126
      %p128 = scmp.ne.s32.totalorder %s117, %s118
      %p129 = scmp.eq.s32.totalorder %s27, 0
      %p130 = por %p128, %p129
      %p131 = scmp.ne.s32.totalorder %s117, %s118
      %p132 = scmp.eq.s32.totalorder %s28, 5
      %p133 = por %p131, %p132
      %p135 = scmp.ne.s32.totalorder %s118, %s134
      %p136 = scmp.eq.s32.totalorder %s28, 0
      %p137 = por %p135, %p136
      %s138 = ssub.s32 %s29, %s41
      %p139 = scmp.eq.s32.totalorder %s138, 0
      %s141 = sadd.s32 %s140, 1
      %s142 = scalar_select %p139, %s140, %s141
      %p145 = pneg %p139
      %p146 = scmp.eq.s32.totalorder %s22, 5
      %p147 = por %p145, %p146
      %p148 = scmp.ne.s32.totalorder %s140, %s143
      %p149 = scmp.eq.s32.totalorder %s22, 0
      %p150 = por %p148, %p149
      %p151 = scmp.ne.s32.totalorder %s140, %s143
      %p152 = scmp.eq.s32.totalorder %s27, 5
      %p153 = por %p151, %p152
      %p154 = scmp.ne.s32.totalorder %s143, %s144
      %p155 = scmp.eq.s32.totalorder %s27, 0
      %p156 = por %p154, %p155
      %p157 = scmp.ne.s32.totalorder %s143, %s144
      %p158 = scmp.eq.s32.totalorder %s28, 5
      %p159 = por %p157, %p158
      %p161 = scmp.ne.s32.totalorder %s144, %s160
      %p162 = scmp.eq.s32.totalorder %s28, 0
      %p163 = por %p161, %p162
      %s165 = sadd.s32 %s164, 1
      %p168 = scmp.eq.s32.totalorder %s22, 5
      %p169 = scmp.ne.s32.totalorder %s164, %s166
      %p170 = scmp.eq.s32.totalorder %s22, 0
      %p171 = por %p169, %p170
      %p172 = scmp.ne.s32.totalorder %s164, %s166
      %p173 = scmp.eq.s32.totalorder %s27, 5
      %p174 = por %p172, %p173
      %p175 = scmp.ne.s32.totalorder %s166, %s167
      %p176 = scmp.eq.s32.totalorder %s27, 0
      %p177 = por %p175, %p176
      %p178 = scmp.ne.s32.totalorder %s166, %s167
      %p179 = scmp.eq.s32.totalorder %s28, 5
      %p180 = por %p178, %p179
      %p182 = scmp.ne.s32.totalorder %s167, %s181
      %p183 = scmp.eq.s32.totalorder %s28, 0
      %p184 = por %p182, %p183
      %s186 = sadd.s32 %s185, 1
      %p189 = scmp.eq.s32.totalorder %s22, 5
      %p190 = scmp.ne.s32.totalorder %s185, %s187
      %p191 = scmp.eq.s32.totalorder %s22, 0
      %p192 = por %p190, %p191
      %p193 = scmp.ne.s32.totalorder %s185, %s187
      %p194 = scmp.eq.s32.totalorder %s27, 5
      %p195 = por %p193, %p194
      %p196 = scmp.ne.s32.totalorder %s187, %s188
      %p197 = scmp.eq.s32.totalorder %s27, 0
      %p198 = por %p196, %p197
      %p199 = scmp.ne.s32.totalorder %s187, %s188
      %p200 = scmp.eq.s32.totalorder %s28, 5
      %p201 = por %p199, %p200
      %p203 = scmp.ne.s32.totalorder %s188, %s202
      %p204 = scmp.eq.s32.totalorder %s28, 0
      %p205 = por %p203, %p204
      %s207 = sadd.s32 %s206, 1
      %p210 = scmp.eq.s32.totalorder %s22, 5
      %p211 = scmp.ne.s32.totalorder %s206, %s208
      %p212 = scmp.eq.s32.totalorder %s22, 0
      %p213 = por %p211, %p212
      %p214 = scmp.ne.s32.totalorder %s206, %s208
      %p215 = scmp.eq.s32.totalorder %s27, 5
      %p216 = por %p214, %p215
      %p217 = scmp.ne.s32.totalorder %s208, %s209
      %p218 = scmp.eq.s32.totalorder %s27, 0
      %p219 = por %p217, %p218
      %p220 = scmp.ne.s32.totalorder %s208, %s209
      %p221 = scmp.eq.s32.totalorder %s28, 5
      %p222 = por %p220, %p221
      %p224 = scmp.ne.s32.totalorder %s209, %s223
      %p225 = scmp.eq.s32.totalorder %s28, 0
      %p226 = por %p224, %p225
      %s227 = ssub.s32 %s29, %s41
      %s228 = ssub.s32 %s30, %s37
      %s229 = sor.u32 %s227, %s228
      %p230 = scmp.eq.s32.totalorder %s229, 0
      %s232 = sadd.s32 %s231, 1
      %s233 = scalar_select %p230, %s231, %s232
      %p236 = pneg %p230
      %p237 = scmp.eq.s32.totalorder %s22, 5
      %p238 = por %p236, %p237
      %p239 = scmp.ne.s32.totalorder %s231, %s234
      %p240 = scmp.eq.s32.totalorder %s22, 0
      %p241 = por %p239, %p240
      %p242 = scmp.ne.s32.totalorder %s231, %s234
      %p243 = scmp.eq.s32.totalorder %s27, 5
      %p244 = por %p242, %p243
      %p245 = scmp.ne.s32.totalorder %s234, %s235
      %p246 = scmp.eq.s32.totalorder %s27, 0
      %p247 = por %p245, %p246
      %p248 = scmp.ne.s32.totalorder %s234, %s235
      %p249 = scmp.eq.s32.totalorder %s28, 5
      %p250 = por %p248, %p249
      %p252 = scmp.ne.s32.totalorder %s235, %s251
      %p253 = scmp.eq.s32.totalorder %s28, 0
      %p254 = por %p252, %p253
      %p255 = scmp.le.s32.totalorder 1, %s22
      %p256 = scmp.lt.s32.totalorder %s22, 7
      %p257 = pnand %p255, %p256
      %p258 = pneg %p257
      // Predicated region
      $region9: #{tpu_custom_call.1} parent=5 // pred_check
        _
      $region10: #{tpu_custom_call.1} parent=5 // pred_check_branch
        %260 = sbr.rel (%p257) target = $region12
      $region11: #{tpu_custom_call.1} parent=5 // pred_region
        %s261 = ssub.s32 %s22, 1
        // Predicated region
        $region13: #{tpu_custom_call.1} parent=11 // pred_check
          %p262 = pneg %p177
        $region14: #{tpu_custom_call.1} parent=11 // pred_check_branch
          %264 = sbr.rel (%p262) target = $region16
        $region15: #{tpu_custom_call.1} parent=11 // pred_region
          _
        $region16: #{tpu_custom_call.1} parent=11 // pred_fallthru
          _
        // Predicated region
        $region17: #{tpu_custom_call.1} parent=11 // pred_check
          %p265 = pneg %p198
        $region18: #{tpu_custom_call.1} parent=11 // pred_check_branch
          %267 = sbr.rel (%p265) target = $region20
        $region19: #{tpu_custom_call.1} parent=11 // pred_region
          _
        $region20: #{tpu_custom_call.1} parent=11 // pred_fallthru
          _
        // Predicated region
        $region21: #{tpu_custom_call.1} parent=11 // pred_check
          %p268 = pneg %p219
        $region22: #{tpu_custom_call.1} parent=11 // pred_check_branch
          %270 = sbr.rel (%p268) target = $region24
        $region23: #{tpu_custom_call.1} parent=11 // pred_region
          _
        $region24: #{tpu_custom_call.1} parent=11 // pred_fallthru
          _
      $region12: #{tpu_custom_call.1} parent=5 // pred_fallthru
        _
      %p271 = scmp.lt.s32.totalorder %s22, 6
      // Predicated region
      $region25: #{tpu_custom_call.1} parent=5 // pred_check
        %p272 = pneg %p271
      $region26: #{tpu_custom_call.1} parent=5 // pred_check_branch
        %274 = sbr.rel (%p272) target = $region28
      $region27: #{tpu_custom_call.1} parent=5 // pred_region
        // Predicated region
        $region29: #{tpu_custom_call.1} parent=27 // pred_check
          %p275 = pneg %p62
        $region30: #{tpu_custom_call.1} parent=27 // pred_check_branch
          %277 = sbr.rel (%p275) target = $region32
        $region31: #{tpu_custom_call.1} parent=27 // pred_region
          %s278 = sand.u32 %s52, 1
          %s279 = sand.u32 %s52, 1
          %s280 = smul.addr %s279, 32
          %s281 = scalar_lea.vmem [#allocation2], %s280
          %s282 = ssub.s32 %s30, 1
          %p283 = scmp.gt.s32.totalorder %s282, 0
          %s284 = scalar_select %p283, %s282, 0
          %s285 = smul.addr %s29, 12
          %s286 = sadd.s32 %s284, %s285
          %s287 = smul.addr %s286, 8
          %s288 = scalar_lea.vmem %s0, %s287
          // Predicated region
          $region33: #{tpu_custom_call.1} parent=31 // pred_check
            _
          $region34: #{tpu_custom_call.1} parent=31 // pred_check_branch
            %290 = sbr.rel (0) target = $region36
          $region35: #{tpu_custom_call.1} parent=31 // pred_region
            // Predicated region
            $region37: #{tpu_custom_call.1} parent=35 // pred_check
              _
            $region38: #{tpu_custom_call.1} parent=35 // pred_check_branch
              %292 = sbr.rel (0) target = $region40
            $region39: #{tpu_custom_call.1} parent=35 // pred_region
              // Predicated region
              $region52: #{tpu_custom_call.1} parent=39 // pred_check
                _
              $region53: #{tpu_custom_call.1} parent=39 // pred_check_branch
                %314 = sbr.rel (0) target = $region55
              $region54: #{tpu_custom_call.1} parent=39 // pred_region
                loop: start=0, step=1, limit=1
                $region56: #{tpu_custom_call.1} parent=54 // loop_pre_header
                  _
                $region57: #{tpu_custom_call.1} parent=54 // loop_header
                  %s316 = sphi 0, %s320
                  %p317 = scmp.ge.s32.totalorder %s316, 1
                  %s321 = sphi %s288, %s288
                  %s322 = sphi %s281, %s281
                $region58: #{tpu_custom_call.1} parent=54 // loop_header_branch
                  %319 = sbr.rel (%p317) target = $region62
                $region59: #{tpu_custom_call.1} parent=54 // loop_body
                  %v323 = vld [vmem:[%s321] sm:$0xff]
                  %324 = vst [vmem:[%s322] sm:$0xff] %v323
                  %v325 = vld [vmem:[%s321 + $0x18] sm:$0xff]
                  %326 = vst [vmem:[%s322 + $0x8] sm:$0xff] %v325
                  %v327 = vld [vmem:[%s321 + $0x30] sm:$0xff]
                  %328 = vst [vmem:[%s322 + $0x10] sm:$0xff] %v327
                  %v329 = vld [vmem:[%s321 + $0x48] sm:$0xff]
                  %330 = vst [vmem:[%s322 + $0x18] sm:$0xff] %v329
                $region60: #{tpu_custom_call.1} parent=54 // loop_footer
                  %s320 = sadd.s32 1, %s316
                $region61: #{tpu_custom_call.1} parent=54 // loop_footer_branch
                  %315 = sbr.rel target = $region57
                $region62: #{tpu_custom_call.1} parent=54 // loop_exit
                  _
              $region55: #{tpu_custom_call.1} parent=39 // pred_fallthru
                _
              // Predicated region
              $region63: #{tpu_custom_call.1} parent=39 // pred_check
                _
              $region64: #{tpu_custom_call.1} parent=39 // pred_check_branch
                %332 = sbr.rel target = $region66
              $region65: #{tpu_custom_call.1} parent=39 // pred_region
                _
              $region66: #{tpu_custom_call.1} parent=39 // pred_fallthru
                _
            $region40: #{tpu_custom_call.1} parent=35 // pred_fallthru
              _
            // Predicated region
            $region41: #{tpu_custom_call.1} parent=35 // pred_check
              _
            $region42: #{tpu_custom_call.1} parent=35 // pred_check_branch
              %294 = sbr.rel target = $region44
            $region43: #{tpu_custom_call.1} parent=35 // pred_region
              %s296 = ssub.s32 256, 1
              loop: start=0, step=1, limit=1
              $region45: #{tpu_custom_call.1} parent=43 // loop_pre_header
                _
              $region46: #{tpu_custom_call.1} parent=43 // loop_header
                %s298 = sphi 0, %s302
                %p299 = scmp.ge.s32.totalorder %s298, 1
                %s303 = sphi %s288, %s288
                %s304 = sphi %s281, %s281
              $region47: #{tpu_custom_call.1} parent=43 // loop_header_branch
                %301 = sbr.rel (%p299) target = $region51
              $region48: #{tpu_custom_call.1} parent=43 // loop_body
                %v305 = vld [vmem:[%s303] sm:%s296]
                %306 = vst [vmem:[%s304] sm:%s296] %v305
                %v307 = vld [vmem:[%s303 + $0x18] sm:%s296]
                %308 = vst [vmem:[%s304 + $0x8] sm:%s296] %v307
                %v309 = vld [vmem:[%s303 + $0x30] sm:%s296]
                %310 = vst [vmem:[%s304 + $0x10] sm:%s296] %v309
                %v311 = vld [vmem:[%s303 + $0x48] sm:%s296]
                %312 = vst [vmem:[%s304 + $0x18] sm:%s296] %v311
              $region49: #{tpu_custom_call.1} parent=43 // loop_footer
                %s302 = sadd.s32 1, %s298
              $region50: #{tpu_custom_call.1} parent=43 // loop_footer_branch
                %297 = sbr.rel target = $region46
              $region51: #{tpu_custom_call.1} parent=43 // loop_exit
                _
            $region44: #{tpu_custom_call.1} parent=35 // pred_fallthru
              _
          $region36: #{tpu_custom_call.1} parent=31 // pred_fallthru
            _
          %333 = vnop
        $region32: #{tpu_custom_call.1} parent=27 // pred_fallthru
          _
        // Predicated region
        $region67: #{tpu_custom_call.1} parent=27 // pred_check
          %p334 = pneg %p90
        $region68: #{tpu_custom_call.1} parent=27 // pred_check_branch
          %336 = sbr.rel (%p334) target = $region70
        $region69: #{tpu_custom_call.1} parent=27 // pred_region
          %s337 = sand.u32 %s80, 1
          %s338 = scalar_lea.sflag [#allocation4], %s337
          %s339 = sand.u32 %s80, 1
          %s340 = smul.addr %s339, 32
          %s341 = scalar_lea.vmem [#allocation3], %s340
          %s343 = ssub.s32 512, 512
          %344 = vsyncadd %s338, %s343
          %s345 = smul.addr %s29, 12
          %s346 = sadd.s32 %s30, %s345
          %s347 = smul.addr %s346, 128
          %s348 = scalar_lea.hbm %s1, %s347
          %s349 = sshll.u32 %s341, 4
          %s350 = int_to_ptr.vmem [resolvable:$true] %s349
          %355 = dma.hbm_to_vmem [thread:$0]  %s348, 512, %s350, %s338, 384, 128, 8
        $region70: #{tpu_custom_call.1} parent=27 // pred_fallthru
          _
        // Predicated region
        $region71: #{tpu_custom_call.1} parent=27 // pred_check
          %p356 = pneg %p124
        $region72: #{tpu_custom_call.1} parent=27 // pred_check_branch
          %358 = sbr.rel (%p356) target = $region74
        $region73: #{tpu_custom_call.1} parent=27 // pred_region
          %s359 = sand.u32 %s114, 1
          %s360 = scalar_lea.sflag [#allocation7], %s359
          %s361 = sand.u32 %s114, 1
          %s362 = smul.addr %s361, 32
          %s363 = scalar_lea.vmem [#allocation6], %s362
          %s364 = sadd.s32 %s30, 1
          %p365 = scmp.lt.s32.totalorder %s364, 2
          %s366 = scalar_select %p365, %s364, 2
          %s368 = ssub.s32 512, 512
          %369 = vsyncadd %s360, %s368
          %s370 = smul.addr %s29, 12
          %s371 = sadd.s32 %s366, %s370
          %s372 = smul.addr %s371, 128
          %s373 = scalar_lea.hbm %s2, %s372
          %s374 = sshll.u32 %s363, 4
          %s375 = int_to_ptr.vmem [resolvable:$true] %s374
          %380 = dma.hbm_to_vmem [thread:$0]  %s373, 512, %s375, %s360, 384, 128, 8
        $region74: #{tpu_custom_call.1} parent=27 // pred_fallthru
          _
        // Predicated region
        $region75: #{tpu_custom_call.1} parent=27 // pred_check
          %p381 = pneg %p150
        $region76: #{tpu_custom_call.1} parent=27 // pred_check_branch
          %383 = sbr.rel (%p381) target = $region78
        $region77: #{tpu_custom_call.1} parent=27 // pred_region
          %p384 = scmp.lt.s32.totalorder %s29, 1
          %s385 = scalar_select %p384, %s29, 1
          %s386 = smul.addr %s385, 12
          %s387 = smul.addr %s386, 8
          %s388 = scalar_lea.vmem %s3, %s387
        $region78: #{tpu_custom_call.1} parent=27 // pred_fallthru
          _
      $region28: #{tpu_custom_call.1} parent=5 // pred_fallthru
        _
      %p389 = scmp.le.s32.totalorder 1, %s22
      %p390 = scmp.lt.s32.totalorder %s22, 7
      %p391 = pnand %p389, %p390
      %p392 = pneg %p391
      // Predicated region
      $region79: #{tpu_custom_call.1} parent=5 // pred_check
        _
      $region80: #{tpu_custom_call.1} parent=5 // pred_check_branch
        %394 = sbr.rel (%p391) target = $region82
      $region81: #{tpu_custom_call.1} parent=5 // pred_region
        %s395 = ssub.s32 %s22, 1
        %s396 = sand.u32 %s55, 1
        %s397 = sand.u32 %s55, 1
        %s398 = smul.addr %s397, 32
        %s399 = scalar_lea.vmem [#allocation2], %s398
        // Predicated region
        $region83: #{tpu_custom_call.1} parent=81 // pred_check
          %p400 = pneg %p68
        $region84: #{tpu_custom_call.1} parent=81 // pred_check_branch
          %402 = sbr.rel (%p400) target = $region86
        $region85: #{tpu_custom_call.1} parent=81 // pred_region
          _
        $region86: #{tpu_custom_call.1} parent=81 // pred_fallthru
          _
        %s403 = sand.u32 %s83, 1
        %s404 = scalar_lea.sflag [#allocation4], %s403
        %s405 = sand.u32 %s83, 1
        %s406 = smul.addr %s405, 32
        %s407 = scalar_lea.vmem [#allocation3], %s406
        // Predicated region
        $region87: #{tpu_custom_call.1} parent=81 // pred_check
          %p408 = pneg %p96
        $region88: #{tpu_custom_call.1} parent=81 // pred_check_branch
          %410 = sbr.rel (%p408) target = $region90
        $region89: #{tpu_custom_call.1} parent=81 // pred_region
          %411 = dma.done %s404, 512
        $region90: #{tpu_custom_call.1} parent=81 // pred_fallthru
          _
        %s412 = sand.u32 %s117, 1
        %s413 = scalar_lea.sflag [#allocation7], %s412
        %s414 = sand.u32 %s117, 1
        %s415 = smul.addr %s414, 32
        %s416 = scalar_lea.vmem [#allocation6], %s415
        // Predicated region
        $region91: #{tpu_custom_call.1} parent=81 // pred_check
          %p417 = pneg %p130
        $region92: #{tpu_custom_call.1} parent=81 // pred_check_branch
          %419 = sbr.rel (%p417) target = $region94
        $region93: #{tpu_custom_call.1} parent=81 // pred_region
          %420 = dma.done %s413, 512
        $region94: #{tpu_custom_call.1} parent=81 // pred_fallthru
          _
        %s421 = sand.u32 %s55, 1
        %s422 = sand.u32 %s55, 1
        %s423 = smul.addr %s422, 32
        %s424 = scalar_lea.vmem [#allocation2], %s423
        %p425 = pneg %p68
        %p426 = pneg %p65
        %s427 = sand.u32 %s83, 1
        %s428 = scalar_lea.sflag [#allocation4], %s427
        %s429 = sand.u32 %s83, 1
        %s430 = smul.addr %s429, 32
        %s431 = scalar_lea.vmem [#allocation3], %s430
        %p432 = pneg %p96
        %p433 = pneg %p93
        %s434 = sand.u32 %s117, 1
        %s435 = scalar_lea.sflag [#allocation7], %s434
        %s436 = sand.u32 %s117, 1
        %s437 = smul.addr %s436, 32
        %s438 = scalar_lea.vmem [#allocation6], %s437
        %p439 = pneg %p130
        %p440 = pneg %p127
        %p441 = scmp.lt.s32.totalorder %s31, 1
        %s442 = scalar_select %p441, %s31, 1
        %s443 = smul.addr %s442, 12
        %s444 = smul.addr %s443, 8
        %s445 = scalar_lea.vmem %s3, %s444
        %p446 = pneg %p156
        %p447 = pneg %p153
        %p448 = pneg %p177
        %p449 = pneg %p174
        %p450 = pneg %p198
        %p451 = pneg %p195
        %p452 = pneg %p219
        %p453 = pneg %p216
        %p454 = pneg %p247
        %p455 = pneg %p244
        %s456 = sand.u32 %s234, 1
        %s457 = scalar_lea.sflag [#allocation5], %s456
        %s458 = sand.u32 %s234, 1
        %s459 = smul.addr %s458, 32
        %s460 = scalar_lea.vmem [#allocation8], %s459
        %s461 = ssub.s32 %s32, 1
        %p462 = scmp.gt.s32.totalorder %s461, 0
        %s463 = scalar_select %p462, %s461, 0
        %s464 = sadd.s32 %s32, 1
        %p465 = scmp.lt.s32.totalorder %s464, 2
        %s466 = scalar_select %p465, %s464, 2
        %p467 = scmp.lt.s32.totalorder %s31, 1
        %s468 = scalar_select %p467, %s31, 1
        %s469 = smul.addr %s468, 12
        %s470 = smul.addr %s469, 8
        %s471 = scalar_lea.vmem %s3, %s470
        %v473 = vld [vmem:[%s399] sm:$0xff]
        %v474 = vld [vmem:[%s399 + $0x8] sm:$0xff]
        %v475 = vld [vmem:[%s399 + $0x10] sm:$0xff]
        %v476 = vld [vmem:[%s399 + $0x18] sm:$0xff]
        %v477 = vld [vmem:[%s416] sm:$0xff]
        %v478 = vld [vmem:[%s416 + $0x8] sm:$0xff]
        %v479 = vld [vmem:[%s416 + $0x10] sm:$0xff]
        %v480 = vld [vmem:[%s416 + $0x18] sm:$0xff]
        %v481 = vld [vmem:[%s407] sm:$0xff]
        %v482 = vld [vmem:[%s407 + $0x8] sm:$0xff]
        %v483 = vld [vmem:[%s407 + $0x10] sm:$0xff]
        %v484 = vld [vmem:[%s407 + $0x18] sm:$0xff]
        %489 = vrot.lane.b32.xlu0 %v473, 12
        %v490 = vpop.permute.xlu0 %489
        %491 = vrot.lane.b32.xlu0 %v474, 12
        %v492 = vpop.permute.xlu0 %491
        %493 = vrot.lane.b32.xlu0 %v475, 12
        %v494 = vpop.permute.xlu0 %493
        %495 = vrot.lane.b32.xlu0 %v476, 12
        %v496 = vpop.permute.xlu0 %495
        %505 = vrot.lane.b32.xlu0 %v481, 12
        %v506 = vpop.permute.xlu0 %505
        %507 = vrot.lane.b32.xlu0 %v482, 12
        %v508 = vpop.permute.xlu0 %507
        %509 = vrot.lane.b32.xlu0 %v483, 12
        %v510 = vpop.permute.xlu0 %509
        %511 = vrot.lane.b32.xlu0 %v484, 12
        %v512 = vpop.permute.xlu0 %511
        %521 = vrot.lane.b32.xlu0 %v477, 12
        %v522 = vpop.permute.xlu0 %521
        %523 = vrot.lane.b32.xlu0 %v478, 12
        %v524 = vpop.permute.xlu0 %523
        %525 = vrot.lane.b32.xlu0 %v479, 12
        %v526 = vpop.permute.xlu0 %525
        %527 = vrot.lane.b32.xlu0 %v480, 12
        %v528 = vpop.permute.xlu0 %527
        %vm533 = vcmask 97280
        %v534 = vsel %vm533, %v490, %v506
        %v535 = vsel %vm533, %v492, %v508
        %v536 = vsel %vm533, %v494, %v510
        %v537 = vsel %vm533, %v496, %v512
        %v538 = vsel %vm533, %v506, %v522
        %v539 = vsel %vm533, %v508, %v524
        %v540 = vsel %vm533, %v510, %v526
        %v541 = vsel %vm533, %v512, %v528
        %s542 = smul.u32 %s32, 128
        %s543 = ssub.s32 %s542, 12
        %v544 = vlaneseq
        %v545 = vand.u32 %v544, 127
        %v546 = vadd.s32 %v545, 128
        %v547 = vstv %s543
        %v548 = vadd.s32 %v547, %v545
        %v549 = vadd.s32 %v547, %v546
        %vm550 = vcmp.ge.s32.totalorder %v548, 0
        %vm551 = vcmp.ge.s32.totalorder %v549, 0
        %vm552 = vcmp.lt.s32.totalorder %v548, 300
        %vm553 = vcmp.lt.s32.totalorder %v549, 300
        %vm554 = vmand %vm550, %vm552
        %vm555 = vmand %vm551, %vm553
        %v556 = vld [vmem:[%s471] sm:$0xff]
        %v557 = vld [vmem:[%s471 + $0x8] sm:$0xff]
        %v558 = vld [vmem:[%s471 + $0x10] sm:$0xff]
        %v559 = vld [vmem:[%s471 + $0x18] sm:$0xff]
        %v560 = vld [vmem:[%s471 + $0x20] sm:$0xff]
        %v561 = vld [vmem:[%s471 + $0x28] sm:$0xff]
        %v562 = vld [vmem:[%s471 + $0x30] sm:$0xff]
        %v563 = vld [vmem:[%s471 + $0x38] sm:$0xff]
        %v564 = vld [vmem:[%s471 + $0x40] sm:$0xff]
        %v565 = vld [vmem:[%s471 + $0x48] sm:$0xff]
        %v566 = vld [vmem:[%s471 + $0x50] sm:$0xff]
        %v567 = vld [vmem:[%s471 + $0x58] sm:$0xff]
        %vm568 = vcmp.ge.f32.partialorder %v534, 0.0
        %vm569 = vcmp.ge.f32.partialorder %v538, 0.0
        %vm570 = vcmp.ge.f32.partialorder %v535, 0.0
        %vm571 = vcmp.ge.f32.partialorder %v539, 0.0
        %vm572 = vcmp.ge.f32.partialorder %v536, 0.0
        %vm573 = vcmp.ge.f32.partialorder %v540, 0.0
        %vm574 = vcmp.ge.f32.partialorder %v537, 0.0
        %vm575 = vcmp.ge.f32.partialorder %v541, 0.0
        %v576 = vmul.f32 %v534, 0.1
        %v577 = vmul.f32 %v538, 0.1
        %v578 = vmul.f32 %v535, 0.1
        %v579 = vmul.f32 %v539, 0.1
        %v580 = vmul.f32 %v536, 0.1
        %v581 = vmul.f32 %v540, 0.1
        %v582 = vmul.f32 %v537, 0.1
        %v583 = vmul.f32 %v541, 0.1
        %v584 = vsel %vm568, %v534, %v576
        %v585 = vsel %vm569, %v538, %v577
        %v586 = vsel %vm570, %v535, %v578
        %v587 = vsel %vm571, %v539, %v579
        %v588 = vsel %vm572, %v536, %v580
        %v589 = vsel %vm573, %v540, %v581
        %v590 = vsel %vm574, %v537, %v582
        %v591 = vsel %vm575, %v541, %v583
        %v592 = vsel %vm554, 1, 0
        %v593 = vsel %vm555, 1, 0
        %vm594 = vcmp.eq.s32.totalorder %v592, 1
        %vm595 = vcmp.eq.s32.totalorder %v593, 1
        %v596 = vsel %vm594, %v584, 0.0
        %v597 = vsel %vm595, %v585, 0.0
        %v598 = vsel %vm594, %v586, 0.0
        %v599 = vsel %vm595, %v587, 0.0
        %v600 = vsel %vm594, %v588, 0.0
        %v601 = vsel %vm595, %v589, 0.0
        %v602 = vsel %vm594, %v590, 0.0
        %v603 = vsel %vm595, %v591, 0.0
        %v604 = vld [vmem:[%s4] sm:$0xf]
        %v605 = vld [vmem:[%s4 + $0x4] sm:$0xf]
        %v606 = vld [vmem:[%s4 + $0x8] sm:$0xf]
        %v607 = vld [vmem:[%s4 + $0xc] sm:$0xf]
        %v608 = vpack.c.bf16 %v598, %v596
        %v609 = vpack.c.bf16 %v599, %v597
        %v610 = vpack.c.bf16 %v602, %v600
        %v611 = vpack.c.bf16 %v603, %v601
        %616 = vrot.lane.b32.xlu0 %v608, 127
        %v617 = vpop.permute.xlu0 %616
        %618 = vrot.lane.b32.xlu0 %v609, 127
        %v619 = vpop.permute.xlu0 %618
        %620 = vrot.lane.b32.xlu0 %v610, 127
        %v621 = vpop.permute.xlu0 %620
        %622 = vrot.lane.b32.xlu0 %v611, 127
        %v623 = vpop.permute.xlu0 %622
        %vm624 = vcmask 1039360
        %v625 = vsel %vm624, %v617, %v619
        %v626 = vsel %vm624, %v621, %v623
        %631 = vrot.lane.b32.xlu0 %v608, 126
        %v632 = vpop.permute.xlu0 %631
        %633 = vrot.lane.b32.xlu0 %v609, 126
        %v634 = vpop.permute.xlu0 %633
        %635 = vrot.lane.b32.xlu0 %v610, 126
        %v636 = vpop.permute.xlu0 %635
        %637 = vrot.lane.b32.xlu0 %v611, 126
        %v638 = vpop.permute.xlu0 %637
        %vm639 = vcmask 1031168
        %v640 = vsel %vm639, %v632, %v634
        %v641 = vsel %vm639, %v636, %v638
        %647 = vset.pattern.permute.xlu0 0
        %648 = vperm.xlu0 %647, %v556
        %v649 = vpop.permute.xlu0 %648
        %652 = vset.pattern.permute.xlu0 0
        %653 = vperm.xlu0 %652, %v557
        %v654 = vpop.permute.xlu0 %653
        %657 = vset.pattern.permute.xlu0 0
        %658 = vperm.xlu0 %657, %v558
        %v659 = vpop.permute.xlu0 %658
        %662 = vset.pattern.permute.xlu0 0
        %663 = vperm.xlu0 %662, %v559
        %v664 = vpop.permute.xlu0 %663
        %v670 = vunpack.c.l.b16 %v604
        %v671 = vunpack.c.l.b16 %v605
        %v672 = vunpack.c.l.b16 %v606
        %v673 = vunpack.c.l.b16 %v607
        %v674 = vpack.c.b16 %v671, %v670
        %v675 = vpack.c.b16 %v673, %v672
        %vm676 = vcmask 785408
        %v678 = vsel %vm676, %v674, 0
        %v681 = vsel %vm676, %v675, 0
        %683 = vmatprep.subr.bf16.mxu0 0
        %684 = vmatpush1.bf16.msra.mxu0 0
        %685 = vmatprep.subr.bf16.mxu0 0
        %686 = vmatpush1.bf16.msra.mxu0 0
        %687 = vmatprep.subr.bf16.mxu0 %v638
        %688 = vmatpush1.bf16.msra.mxu0 %v641
        %689 = vmatprep.subr.bf16.mxu0 %v634
        %690 = vmatpush1.bf16.msra.mxu0 %v640
        %691 = vmatprep.subr.bf16.mxu0 %v623
        %692 = vmatpush1.bf16.msra.mxu0 %v626
        %693 = vmatprep.subr.bf16.mxu0 %v619
        %694 = vmatpush1.bf16.msra.mxu0 %v625
        %695 = vmatprep.subr.bf16.mxu0 %v611
        %696 = vmatpush1.bf16.msra.mxu0 %v610
        %697 = vmatprep.subr.bf16.mxu0 %v609
        %698 = vmatpush1.bf16.msra.mxu0 %v608
        %699 = vmatprep.subr.bf16.mxu0 0
        %700 = vmatpush2.bf16.msra.mxu0 0
        %701 = vmatprep.subr.bf16.mxu0 0
        %702 = vmatpush2.bf16.msra.mxu0 0
        %703 = vmatprep.subr.bf16.mxu0 0
        %704 = vmatpush2.bf16.msra.mxu0 0
        %705 = vmatprep.subr.bf16.mxu0 0
        %706 = vmatpush2.bf16.msra.mxu0 0
        %707 = vmatprep.subr.bf16.mxu0 0
        %708 = vmatpush2.bf16.msra.mxu0 0
        %709 = vmatprep.subr.bf16.mxu0 0
        %710 = vmatpush2.bf16.msra.mxu0 0
        %711 = vmatprep.subr.bf16.mxu0 0
        %712 = vmatpush2.bf16.msra.mxu0 0
        %713 = vmatprep.subr.bf16.mxu0 0
        %714 = vmatpush2.bf16.msra.mxu0 0
        %715 = vmatprep.mubr.bf16.mxu0 0
        %716 = vmatmul.mubr.bf16.gmra.mxu0 %v678
        %v717 = vpop.f32.mrf.mxu0
        %v718 = vadd.f32 %v649, %v717
        %v719 = vpop.f32.mrf.mxu0
        %v720 = vadd.f32 %v649, %v719
        %v721 = vpop.f32.mrf.mxu0
        %v722 = vadd.f32 %v654, %v721
        %v723 = vpop.f32.mrf.mxu0
        %v724 = vadd.f32 %v654, %v723
        %725 = vmatprep.mubr.bf16.mxu0 0
        %726 = vmatmul.mubr.bf16.gmra.mxu0 %v681
        %v727 = vpop.f32.mrf.mxu0
        %v728 = vadd.f32 %v659, %v727
        %v729 = vpop.f32.mrf.mxu0
        %v730 = vadd.f32 %v659, %v729
        %v731 = vpop.f32.mrf.mxu0
        %v732 = vadd.f32 %v664, %v731
        %v733 = vpop.f32.mrf.mxu0
        %v734 = vadd.f32 %v664, %v733
        %735 = vdwg.mxu0
        %v736 = vtanh.pop %v718
        %v737 = vtanh.pop %v720
        %v738 = vtanh.pop %v722
        %v739 = vtanh.pop %v724
        %v740 = vxor.u32 %v728, 2147483648
        %v741 = vxor.u32 %v730, 2147483648
        %v742 = vxor.u32 %v732, 2147483648
        %v743 = vxor.u32 %v734, 2147483648
        %v744 = vmul.f32 %v740, 1.442695
        %v745 = vpow.pop %v744
        %v746 = vmul.f32 %v741, 1.442695
        %v747 = vpow.pop %v746
        %v748 = vmul.f32 %v742, 1.442695
        %v749 = vpow.pop %v748
        %v750 = vmul.f32 %v743, 1.442695
        %v751 = vpow.pop %v750
        %v752 = vadd.f32 %v745, 1.0
        %v753 = vadd.f32 %v747, 1.0
        %v754 = vadd.f32 %v749, 1.0
        %v755 = vadd.f32 %v751, 1.0
        %v756 = vrcp.pop %v752
        %v757 = vmul.f32 1.0, %v756
        %v758 = vrcp.pop %v753
        %v759 = vmul.f32 1.0, %v758
        %v760 = vrcp.pop %v754
        %v761 = vmul.f32 1.0, %v760
        %v762 = vrcp.pop %v755
        %v763 = vmul.f32 1.0, %v762
        %v764 = vmul.f32 %v736, %v757
        %v765 = vmul.f32 %v737, %v759
        %v766 = vmul.f32 %v738, %v761
        %v767 = vmul.f32 %v739, %v763
        %772 = vrot.lane.b32.xlu0 %v764, 1
        %v773 = vpop.permute.xlu0 %772
        %774 = vrot.lane.b32.xlu0 %v765, 1
        %v775 = vpop.permute.xlu0 %774
        %776 = vrot.lane.b32.xlu0 %v766, 1
        %v777 = vpop.permute.xlu0 %776
        %778 = vrot.lane.b32.xlu0 %v767, 1
        %v779 = vpop.permute.xlu0 %778
        %vm780 = vcmask 7168
        %v781 = vsel %vm780, %v773, %v775
        %v782 = vsel %vm780, %v777, %v779
        %v787 = vsel %vm594, %v773, 0.0
        %v788 = vsel %vm595, %v781, 0.0
        %v789 = vsel %vm594, %v777, 0.0
        %v790 = vsel %vm595, %v782, 0.0
        %v791 = vld [vmem:[%s5] sm:$0xf]
        %v792 = vld [vmem:[%s5 + $0x4] sm:$0xf]
        %v793 = vld [vmem:[%s5 + $0x8] sm:$0xf]
        %v794 = vld [vmem:[%s5 + $0xc] sm:$0xf]
        %v795 = vpack.c.bf16 %v789, %v787
        %v796 = vpack.c.bf16 %v790, %v788
        %799 = vrot.lane.b32.xlu0 %v795, 127
        %v800 = vpop.permute.xlu0 %799
        %801 = vrot.lane.b32.xlu0 %v796, 127
        %v802 = vpop.permute.xlu0 %801
        %v803 = vsel %vm624, %v800, %v802
        %804 = vrot.lane.b32.xlu0 %v795, 126
        %v805 = vpop.permute.xlu0 %804
        %806 = vrot.lane.b32.xlu0 %v796, 126
        %v807 = vpop.permute.xlu0 %806
        %v808 = vsel %vm639, %v805, %v807
        %v809 = vld [vmem:[%s6] sm:$0xff]
        %v810 = vld [vmem:[%s6 + $0x8] sm:$0xff]
        %v811 = vld [vmem:[%s6 + $0x10] sm:$0xff]
        %v812 = vld [vmem:[%s6 + $0x18] sm:$0xff]
        %814 = vset.pattern.permute.xlu0 0
        %815 = vperm.xlu0 %814, %v809
        %v816 = vpop.permute.xlu0 %815
        %819 = vset.pattern.permute.xlu0 0
        %820 = vperm.xlu0 %819, %v810
        %v821 = vpop.permute.xlu0 %820
        %824 = vset.pattern.permute.xlu0 0
        %825 = vperm.xlu0 %824, %v811
        %v826 = vpop.permute.xlu0 %825
        %829 = vset.pattern.permute.xlu0 0
        %830 = vperm.xlu0 %829, %v812
        %v831 = vpop.permute.xlu0 %830
        %v837 = vunpack.c.l.b16 %v791
        %v838 = vunpack.c.l.b16 %v792
        %v839 = vunpack.c.l.b16 %v793
        %v840 = vunpack.c.l.b16 %v794
        %v841 = vpack.c.b16 %v838, %v837
        %v842 = vpack.c.b16 %v840, %v839
        %843 = vrot.lane.b32.xlu0 %v803, 127
        %v844 = vpop.permute.xlu0 %843
        %845 = vrot.lane.b32.xlu0 %v802, 127
        %v846 = vpop.permute.xlu0 %845
        %847 = vrot.lane.b32.xlu0 %v808, 127
        %v848 = vpop.permute.xlu0 %847
        %849 = vrot.lane.b32.xlu0 %v807, 127
        %v850 = vpop.permute.xlu0 %849
        %v851 = vsel %vm624, %v844, %v846
        %v852 = vsel %vm624, %v848, %v850
        %vm859 = vcmask 392192
        %v861 = vsel %vm859, %v841, 0
        %v864 = vsel %vm859, %v842, 0
        %866 = vmatprep.subr.bf16.mxu0 0
        %867 = vmatpush1.bf16.msra.mxu0 0
        %868 = vmatprep.subr.bf16.mxu0 0
        %869 = vmatpush1.bf16.msra.mxu0 0
        %870 = vmatprep.subr.bf16.mxu0 0
        %871 = vmatpush1.bf16.msra.mxu0 0
        %872 = vmatprep.subr.bf16.mxu0 0
        %873 = vmatpush1.bf16.msra.mxu0 0
        %874 = vmatprep.subr.bf16.mxu0 0
        %875 = vmatpush1.bf16.msra.mxu0 0
        %876 = vmatprep.subr.bf16.mxu0 %v850
        %877 = vmatpush1.bf16.msra.mxu0 %v852
        %878 = vmatprep.subr.bf16.mxu0 %v846
        %879 = vmatpush1.bf16.msra.mxu0 %v851
        %880 = vmatprep.subr.bf16.mxu0 %v802
        %881 = vmatpush1.bf16.msra.mxu0 %v803
        %882 = vmatprep.subr.bf16.mxu0 0
        %883 = vmatpush2.bf16.msra.mxu0 0
        %884 = vmatprep.subr.bf16.mxu0 0
        %885 = vmatpush2.bf16.msra.mxu0 0
        %886 = vmatprep.subr.bf16.mxu0 0
        %887 = vmatpush2.bf16.msra.mxu0 0
        %888 = vmatprep.subr.bf16.mxu0 0
        %889 = vmatpush2.bf16.msra.mxu0 0
        %890 = vmatprep.subr.bf16.mxu0 0
        %891 = vmatpush2.bf16.msra.mxu0 0
        %892 = vmatprep.subr.bf16.mxu0 0
        %893 = vmatpush2.bf16.msra.mxu0 0
        %894 = vmatprep.subr.bf16.mxu0 0
        %895 = vmatpush2.bf16.msra.mxu0 0
        %896 = vmatprep.subr.bf16.mxu0 0
        %897 = vmatpush2.bf16.msra.mxu0 0
        %898 = vmatprep.mubr.bf16.mxu0 0
        %899 = vmatmul.mubr.bf16.gmra.mxu0 %v861
        %v900 = vpop.f32.mrf.mxu0
        %v901 = vadd.f32 %v816, %v900
        %v902 = vpop.f32.mrf.mxu0
        %v903 = vadd.f32 %v816, %v902
        %v904 = vpop.f32.mrf.mxu0
        %v905 = vadd.f32 %v821, %v904
        %v906 = vpop.f32.mrf.mxu0
        %v907 = vadd.f32 %v821, %v906
        %908 = vmatprep.mubr.bf16.mxu0 0
        %909 = vmatmul.mubr.bf16.gmra.mxu0 %v864
        %v910 = vpop.f32.mrf.mxu0
        %v911 = vadd.f32 %v826, %v910
        %v912 = vpop.f32.mrf.mxu0
        %v913 = vadd.f32 %v826, %v912
        %v914 = vpop.f32.mrf.mxu0
        %v915 = vadd.f32 %v831, %v914
        %v916 = vpop.f32.mrf.mxu0
        %v917 = vadd.f32 %v831, %v916
        %918 = vdwg.mxu0
        %927 = vrot.lane.b32.xlu0 %v534, 126
        %v928 = vpop.permute.xlu0 %927
        %929 = vrot.lane.b32.xlu0 %v538, 126
        %v930 = vpop.permute.xlu0 %929
        %931 = vrot.lane.b32.xlu0 %v535, 126
        %v932 = vpop.permute.xlu0 %931
        %933 = vrot.lane.b32.xlu0 %v539, 126
        %v934 = vpop.permute.xlu0 %933
        %935 = vrot.lane.b32.xlu0 %v536, 126
        %v936 = vpop.permute.xlu0 %935
        %937 = vrot.lane.b32.xlu0 %v540, 126
        %v938 = vpop.permute.xlu0 %937
        %939 = vrot.lane.b32.xlu0 %v537, 126
        %v940 = vpop.permute.xlu0 %939
        %941 = vrot.lane.b32.xlu0 %v541, 126
        %v942 = vpop.permute.xlu0 %941
        %vm943 = vcmask 1031168
        %v944 = vsel %vm943, %v928, %v930
        %v945 = vsel %vm943, %v932, %v934
        %v946 = vsel %vm943, %v936, %v938
        %v947 = vsel %vm943, %v940, %v942
        %v956 = vadd.f32 %v901, %v944
        %v957 = vadd.f32 %v903, %v930
        %v958 = vadd.f32 %v905, %v945
        %v959 = vadd.f32 %v907, %v934
        %v960 = vadd.f32 %v911, %v946
        %v961 = vadd.f32 %v913, %v938
        %v962 = vadd.f32 %v915, %v947
        %v963 = vadd.f32 %v917, %v942
        %vm964 = vcmp.ge.f32.partialorder %v956, 0.0
        %vm965 = vcmp.ge.f32.partialorder %v957, 0.0
        %vm966 = vcmp.ge.f32.partialorder %v958, 0.0
        %vm967 = vcmp.ge.f32.partialorder %v959, 0.0
        %vm968 = vcmp.ge.f32.partialorder %v960, 0.0
        %vm969 = vcmp.ge.f32.partialorder %v961, 0.0
        %vm970 = vcmp.ge.f32.partialorder %v962, 0.0
        %vm971 = vcmp.ge.f32.partialorder %v963, 0.0
        %v972 = vmul.f32 %v956, 0.1
        %v973 = vmul.f32 %v957, 0.1
        %v974 = vmul.f32 %v958, 0.1
        %v975 = vmul.f32 %v959, 0.1
        %v976 = vmul.f32 %v960, 0.1
        %v977 = vmul.f32 %v961, 0.1
        %v978 = vmul.f32 %v962, 0.1
        %v979 = vmul.f32 %v963, 0.1
        %v980 = vsel %vm964, %v956, %v972
        %v981 = vsel %vm965, %v957, %v973
        %v982 = vsel %vm966, %v958, %v974
        %v983 = vsel %vm967, %v959, %v975
        %v984 = vsel %vm968, %v960, %v976
        %v985 = vsel %vm969, %v961, %v977
        %v986 = vsel %vm970, %v962, %v978
        %v987 = vsel %vm971, %v963, %v979
        %996 = vrot.lane.b32.xlu0 %v980, 2
        %v997 = vpop.permute.xlu0 %996
        %998 = vrot.lane.b32.xlu0 %v981, 2
        %v999 = vpop.permute.xlu0 %998
        %1000 = vrot.lane.b32.xlu0 %v982, 2
        %v1001 = vpop.permute.xlu0 %1000
        %1002 = vrot.lane.b32.xlu0 %v983, 2
        %v1003 = vpop.permute.xlu0 %1002
        %1004 = vrot.lane.b32.xlu0 %v984, 2
        %v1005 = vpop.permute.xlu0 %1004
        %1006 = vrot.lane.b32.xlu0 %v985, 2
        %v1007 = vpop.permute.xlu0 %1006
        %1008 = vrot.lane.b32.xlu0 %v986, 2
        %v1009 = vpop.permute.xlu0 %1008
        %1010 = vrot.lane.b32.xlu0 %v987, 2
        %v1011 = vpop.permute.xlu0 %1010
        %vm1012 = vcmask 15360
        %v1013 = vsel %vm1012, %v997, %v999
        %v1014 = vsel %vm1012, %v1001, %v1003
        %v1015 = vsel %vm1012, %v1005, %v1007
        %v1016 = vsel %vm1012, %v1009, %v1011
        %v1025 = vsel %vm594, %v997, 0.0
        %v1026 = vsel %vm595, %v1013, 0.0
        %v1027 = vsel %vm594, %v1001, 0.0
        %v1028 = vsel %vm595, %v1014, 0.0
        %v1029 = vsel %vm594, %v1005, 0.0
        %v1030 = vsel %vm595, %v1015, 0.0
        %v1031 = vsel %vm594, %v1009, 0.0
        %v1032 = vsel %vm595, %v1016, 0.0
        %s1033 = scalar_lea.vmem %s4, 16
        %v1034 = vld [vmem:[%s1033] sm:$0xf]
        %v1035 = vld [vmem:[%s1033 + $0x4] sm:$0xf]
        %v1036 = vld [vmem:[%s1033 + $0x8] sm:$0xf]
        %v1037 = vld [vmem:[%s1033 + $0xc] sm:$0xf]
        %v1038 = vpack.c.bf16 %v1027, %v1025
        %v1039 = vpack.c.bf16 %v1028, %v1026
        %v1040 = vpack.c.bf16 %v1031, %v1029
        %v1041 = vpack.c.bf16 %v1032, %v1030
        %1046 = vrot.lane.b32.xlu0 %v1038, 125
        %v1047 = vpop.permute.xlu0 %1046
        %1048 = vrot.lane.b32.xlu0 %v1039, 125
        %v1049 = vpop.permute.xlu0 %1048
        %1050 = vrot.lane.b32.xlu0 %v1040, 125
        %v1051 = vpop.permute.xlu0 %1050
        %1052 = vrot.lane.b32.xlu0 %v1041, 125
        %v1053 = vpop.permute.xlu0 %1052
        %vm1054 = vcmask 1022976
        %v1055 = vsel %vm1054, %v1047, %v1049
        %v1056 = vsel %vm1054, %v1051, %v1053
        %1057 = vrot.lane.b32.xlu0 %v1038, 122
        %v1058 = vpop.permute.xlu0 %1057
        %1059 = vrot.lane.b32.xlu0 %v1039, 122
        %v1060 = vpop.permute.xlu0 %1059
        %1061 = vrot.lane.b32.xlu0 %v1040, 122
        %v1062 = vpop.permute.xlu0 %1061
        %1063 = vrot.lane.b32.xlu0 %v1041, 122
        %v1064 = vpop.permute.xlu0 %1063
        %vm1065 = vcmask 998400
        %v1066 = vsel %vm1065, %v1058, %v1060
        %v1067 = vsel %vm1065, %v1062, %v1064
        %1069 = vset.pattern.permute.xlu0 0
        %1070 = vperm.xlu0 %1069, %v560
        %v1071 = vpop.permute.xlu0 %1070
        %1074 = vset.pattern.permute.xlu0 0
        %1075 = vperm.xlu0 %1074, %v561
        %v1076 = vpop.permute.xlu0 %1075
        %1079 = vset.pattern.permute.xlu0 0
        %1080 = vperm.xlu0 %1079, %v562
        %v1081 = vpop.permute.xlu0 %1080
        %1084 = vset.pattern.permute.xlu0 0
        %1085 = vperm.xlu0 %1084, %v563
        %v1086 = vpop.permute.xlu0 %1085
        %v1092 = vunpack.c.l.b16 %v1034
        %v1093 = vunpack.c.l.b16 %v1035
        %v1094 = vunpack.c.l.b16 %v1036
        %v1095 = vunpack.c.l.b16 %v1037
        %v1096 = vpack.c.b16 %v1093, %v1092
        %v1097 = vpack.c.b16 %v1095, %v1094
        %1098 = vrot.lane.b32.xlu0 %v1038, 126
        %v1099 = vpop.permute.xlu0 %1098
        %1100 = vrot.lane.b32.xlu0 %v1039, 126
        %v1101 = vpop.permute.xlu0 %1100
        %1102 = vrot.lane.b32.xlu0 %v1040, 126
        %v1103 = vpop.permute.xlu0 %1102
        %1104 = vrot.lane.b32.xlu0 %v1041, 126
        %v1105 = vpop.permute.xlu0 %1104
        %1106 = vrot.lane.b32.xlu0 %v1055, 126
        %v1107 = vpop.permute.xlu0 %1106
        %1108 = vrot.lane.b32.xlu0 %v1049, 126
        %v1109 = vpop.permute.xlu0 %1108
        %1110 = vrot.lane.b32.xlu0 %v1056, 126
        %v1111 = vpop.permute.xlu0 %1110
        %1112 = vrot.lane.b32.xlu0 %v1053, 126
        %v1113 = vpop.permute.xlu0 %1112
        %1114 = vrot.lane.b32.xlu0 %v1066, 126
        %v1115 = vpop.permute.xlu0 %1114
        %1116 = vrot.lane.b32.xlu0 %v1060, 126
        %v1117 = vpop.permute.xlu0 %1116
        %1118 = vrot.lane.b32.xlu0 %v1067, 126
        %v1119 = vpop.permute.xlu0 %1118
        %1120 = vrot.lane.b32.xlu0 %v1064, 126
        %v1121 = vpop.permute.xlu0 %1120
        %v1122 = vsel %vm639, %v1099, %v1101
        %v1123 = vsel %vm639, %v1103, %v1105
        %v1124 = vsel %vm639, %v1107, %v1109
        %v1125 = vsel %vm639, %v1111, %v1113
        %v1126 = vsel %vm639, %v1115, %v1117
        %v1127 = vsel %vm639, %v1119, %v1121
        %v1141 = vsel %vm676, %v1096, 0
        %v1144 = vsel %vm676, %v1097, 0
        %1146 = vmatprep.subr.bf16.mxu0 0
        %1147 = vmatpush1.bf16.msra.mxu0 0
        %1148 = vmatprep.subr.bf16.mxu0 0
        %1149 = vmatpush1.bf16.msra.mxu0 0
        %1150 = vmatprep.subr.bf16.mxu0 %v1121
        %1151 = vmatpush1.bf16.msra.mxu0 %v1127
        %1152 = vmatprep.subr.bf16.mxu0 %v1117
        %1153 = vmatpush1.bf16.msra.mxu0 %v1126
        %1154 = vmatprep.subr.bf16.mxu0 %v1113
        %1155 = vmatpush1.bf16.msra.mxu0 %v1125
        %1156 = vmatprep.subr.bf16.mxu0 %v1109
        %1157 = vmatpush1.bf16.msra.mxu0 %v1124
        %1158 = vmatprep.subr.bf16.mxu0 %v1105
        %1159 = vmatpush1.bf16.msra.mxu0 %v1123
        %1160 = vmatprep.subr.bf16.mxu0 %v1101
        %1161 = vmatpush1.bf16.msra.mxu0 %v1122
        %1162 = vmatprep.subr.bf16.mxu0 0
        %1163 = vmatpush2.bf16.msra.mxu0 0
        %1164 = vmatprep.subr.bf16.mxu0 0
        %1165 = vmatpush2.bf16.msra.mxu0 0
        %1166 = vmatprep.subr.bf16.mxu0 0
        %1167 = vmatpush2.bf16.msra.mxu0 0
        %1168 = vmatprep.subr.bf16.mxu0 0
        %1169 = vmatpush2.bf16.msra.mxu0 0
        %1170 = vmatprep.subr.bf16.mxu0 0
        %1171 = vmatpush2.bf16.msra.mxu0 0
        %1172 = vmatprep.subr.bf16.mxu0 0
        %1173 = vmatpush2.bf16.msra.mxu0 0
        %1174 = vmatprep.subr.bf16.mxu0 0
        %1175 = vmatpush2.bf16.msra.mxu0 0
        %1176 = vmatprep.subr.bf16.mxu0 0
        %1177 = vmatpush2.bf16.msra.mxu0 0
        %1178 = vmatprep.mubr.bf16.mxu0 0
        %1179 = vmatmul.mubr.bf16.gmra.mxu0 %v1141
        %v1180 = vpop.f32.mrf.mxu0
        %v1181 = vadd.f32 %v1071, %v1180
        %v1182 = vpop.f32.mrf.mxu0
        %v1183 = vadd.f32 %v1071, %v1182
        %v1184 = vpop.f32.mrf.mxu0
        %v1185 = vadd.f32 %v1076, %v1184
        %v1186 = vpop.f32.mrf.mxu0
        %v1187 = vadd.f32 %v1076, %v1186
        %1188 = vmatprep.mubr.bf16.mxu0 0
        %1189 = vmatmul.mubr.bf16.gmra.mxu0 %v1144
        %v1190 = vpop.f32.mrf.mxu0
        %v1191 = vadd.f32 %v1081, %v1190
        %v1192 = vpop.f32.mrf.mxu0
        %v1193 = vadd.f32 %v1081, %v1192
        %v1194 = vpop.f32.mrf.mxu0
        %v1195 = vadd.f32 %v1086, %v1194
        %v1196 = vpop.f32.mrf.mxu0
        %v1197 = vadd.f32 %v1086, %v1196
        %1198 = vdwg.mxu0
        %v1199 = vtanh.pop %v1181
        %v1200 = vtanh.pop %v1183
        %v1201 = vtanh.pop %v1185
        %v1202 = vtanh.pop %v1187
        %v1203 = vxor.u32 %v1191, 2147483648
        %v1204 = vxor.u32 %v1193, 2147483648
        %v1205 = vxor.u32 %v1195, 2147483648
        %v1206 = vxor.u32 %v1197, 2147483648
        %v1207 = vmul.f32 %v1203, 1.442695
        %v1208 = vpow.pop %v1207
        %v1209 = vmul.f32 %v1204, 1.442695
        %v1210 = vpow.pop %v1209
        %v1211 = vmul.f32 %v1205, 1.442695
        %v1212 = vpow.pop %v1211
        %v1213 = vmul.f32 %v1206, 1.442695
        %v1214 = vpow.pop %v1213
        %v1215 = vadd.f32 %v1208, 1.0
        %v1216 = vadd.f32 %v1210, 1.0
        %v1217 = vadd.f32 %v1212, 1.0
        %v1218 = vadd.f32 %v1214, 1.0
        %v1219 = vrcp.pop %v1215
        %v1220 = vmul.f32 1.0, %v1219
        %v1221 = vrcp.pop %v1216
        %v1222 = vmul.f32 1.0, %v1221
        %v1223 = vrcp.pop %v1217
        %v1224 = vmul.f32 1.0, %v1223
        %v1225 = vrcp.pop %v1218
        %v1226 = vmul.f32 1.0, %v1225
        %v1227 = vmul.f32 %v1199, %v1220
        %v1228 = vmul.f32 %v1200, %v1222
        %v1229 = vmul.f32 %v1201, %v1224
        %v1230 = vmul.f32 %v1202, %v1226
        %1235 = vrot.lane.b32.xlu0 %v1227, 5
        %v1236 = vpop.permute.xlu0 %1235
        %1237 = vrot.lane.b32.xlu0 %v1228, 5
        %v1238 = vpop.permute.xlu0 %1237
        %1239 = vrot.lane.b32.xlu0 %v1229, 5
        %v1240 = vpop.permute.xlu0 %1239
        %1241 = vrot.lane.b32.xlu0 %v1230, 5
        %v1242 = vpop.permute.xlu0 %1241
        %vm1243 = vcmask 39936
        %v1244 = vsel %vm1243, %v1236, %v1238
        %v1245 = vsel %vm1243, %v1240, %v1242
        %v1250 = vsel %vm594, %v1236, 0.0
        %v1251 = vsel %vm595, %v1244, 0.0
        %v1252 = vsel %vm594, %v1240, 0.0
        %v1253 = vsel %vm595, %v1245, 0.0
        %s1254 = scalar_lea.vmem %s5, 16
        %v1255 = vld [vmem:[%s1254] sm:$0xf]
        %v1256 = vld [vmem:[%s1254 + $0x4] sm:$0xf]
        %v1257 = vld [vmem:[%s1254 + $0x8] sm:$0xf]
        %v1258 = vld [vmem:[%s1254 + $0xc] sm:$0xf]
        %v1259 = vpack.c.bf16 %v1252, %v1250
        %v1260 = vpack.c.bf16 %v1253, %v1251
        %1263 = vrot.lane.b32.xlu0 %v1259, 127
        %v1264 = vpop.permute.xlu0 %1263
        %1265 = vrot.lane.b32.xlu0 %v1260, 127
        %v1266 = vpop.permute.xlu0 %1265
        %v1267 = vsel %vm624, %v1264, %v1266
        %1268 = vrot.lane.b32.xlu0 %v1259, 126
        %v1269 = vpop.permute.xlu0 %1268
        %1270 = vrot.lane.b32.xlu0 %v1260, 126
        %v1271 = vpop.permute.xlu0 %1270
        %v1272 = vsel %vm639, %v1269, %v1271
        %s1273 = scalar_lea.vmem %s6, 32
        %v1274 = vld [vmem:[%s1273] sm:$0xff]
        %v1275 = vld [vmem:[%s1273 + $0x8] sm:$0xff]
        %v1276 = vld [vmem:[%s1273 + $0x10] sm:$0xff]
        %v1277 = vld [vmem:[%s1273 + $0x18] sm:$0xff]
        %1279 = vset.pattern.permute.xlu0 0
        %1280 = vperm.xlu0 %1279, %v1274
        %v1281 = vpop.permute.xlu0 %1280
        %1284 = vset.pattern.permute.xlu0 0
        %1285 = vperm.xlu0 %1284, %v1275
        %v1286 = vpop.permute.xlu0 %1285
        %1289 = vset.pattern.permute.xlu0 0
        %1290 = vperm.xlu0 %1289, %v1276
        %v1291 = vpop.permute.xlu0 %1290
        %1294 = vset.pattern.permute.xlu0 0
        %1295 = vperm.xlu0 %1294, %v1277
        %v1296 = vpop.permute.xlu0 %1295
        %v1302 = vunpack.c.l.b16 %v1255
        %v1303 = vunpack.c.l.b16 %v1256
        %v1304 = vunpack.c.l.b16 %v1257
        %v1305 = vunpack.c.l.b16 %v1258
        %v1306 = vpack.c.b16 %v1303, %v1302
        %v1307 = vpack.c.b16 %v1305, %v1304
        %1308 = vrot.lane.b32.xlu0 %v1259, 123
        %v1309 = vpop.permute.xlu0 %1308
        %1310 = vrot.lane.b32.xlu0 %v1260, 123
        %v1311 = vpop.permute.xlu0 %1310
        %1312 = vrot.lane.b32.xlu0 %v1267, 123
        %v1313 = vpop.permute.xlu0 %1312
        %1314 = vrot.lane.b32.xlu0 %v1266, 123
        %v1315 = vpop.permute.xlu0 %1314
        %1316 = vrot.lane.b32.xlu0 %v1272, 123
        %v1317 = vpop.permute.xlu0 %1316
        %1318 = vrot.lane.b32.xlu0 %v1271, 123
        %v1319 = vpop.permute.xlu0 %1318
        %vm1320 = vcmask 1006592
        %v1321 = vsel %vm1320, %v1309, %v1311
        %v1322 = vsel %vm1320, %v1313, %v1315
        %v1323 = vsel %vm1320, %v1317, %v1319
        %v1331 = vsel %vm859, %v1306, 0
        %v1334 = vsel %vm859, %v1307, 0
        %1336 = vmatprep.subr.bf16.mxu0 0
        %1337 = vmatpush1.bf16.msra.mxu0 0
        %1338 = vmatprep.subr.bf16.mxu0 0
        %1339 = vmatpush1.bf16.msra.mxu0 0
        %1340 = vmatprep.subr.bf16.mxu0 0
        %1341 = vmatpush1.bf16.msra.mxu0 0
        %1342 = vmatprep.subr.bf16.mxu0 0
        %1343 = vmatpush1.bf16.msra.mxu0 0
        %1344 = vmatprep.subr.bf16.mxu0 0
        %1345 = vmatpush1.bf16.msra.mxu0 0
        %1346 = vmatprep.subr.bf16.mxu0 %v1319
        %1347 = vmatpush1.bf16.msra.mxu0 %v1323
        %1348 = vmatprep.subr.bf16.mxu0 %v1315
        %1349 = vmatpush1.bf16.msra.mxu0 %v1322
        %1350 = vmatprep.subr.bf16.mxu0 %v1311
        %1351 = vmatpush1.bf16.msra.mxu0 %v1321
        %1352 = vmatprep.subr.bf16.mxu0 0
        %1353 = vmatpush2.bf16.msra.mxu0 0
        %1354 = vmatprep.subr.bf16.mxu0 0
        %1355 = vmatpush2.bf16.msra.mxu0 0
        %1356 = vmatprep.subr.bf16.mxu0 0
        %1357 = vmatpush2.bf16.msra.mxu0 0
        %1358 = vmatprep.subr.bf16.mxu0 0
        %1359 = vmatpush2.bf16.msra.mxu0 0
        %1360 = vmatprep.subr.bf16.mxu0 0
        %1361 = vmatpush2.bf16.msra.mxu0 0
        %1362 = vmatprep.subr.bf16.mxu0 0
        %1363 = vmatpush2.bf16.msra.mxu0 0
        %1364 = vmatprep.subr.bf16.mxu0 0
        %1365 = vmatpush2.bf16.msra.mxu0 0
        %1366 = vmatprep.subr.bf16.mxu0 0
        %1367 = vmatpush2.bf16.msra.mxu0 0
        %1368 = vmatprep.mubr.bf16.mxu0 0
        %1369 = vmatmul.mubr.bf16.gmra.mxu0 %v1331
        %v1370 = vpop.f32.mrf.mxu0
        %v1371 = vadd.f32 %v1281, %v1370
        %v1372 = vpop.f32.mrf.mxu0
        %v1373 = vadd.f32 %v1281, %v1372
        %v1374 = vpop.f32.mrf.mxu0
        %v1375 = vadd.f32 %v1286, %v1374
        %v1376 = vpop.f32.mrf.mxu0
        %v1377 = vadd.f32 %v1286, %v1376
        %1378 = vmatprep.mubr.bf16.mxu0 0
        %1379 = vmatmul.mubr.bf16.gmra.mxu0 %v1334
        %v1380 = vpop.f32.mrf.mxu0
        %v1381 = vadd.f32 %v1291, %v1380
        %v1382 = vpop.f32.mrf.mxu0
        %v1383 = vadd.f32 %v1291, %v1382
        %v1384 = vpop.f32.mrf.mxu0
        %v1385 = vadd.f32 %v1296, %v1384
        %v1386 = vpop.f32.mrf.mxu0
        %v1387 = vadd.f32 %v1296, %v1386
        %1388 = vdwg.mxu0
        %1397 = vrot.lane.b32.xlu0 %v956, 124
        %v1398 = vpop.permute.xlu0 %1397
        %1399 = vrot.lane.b32.xlu0 %v957, 124
        %v1400 = vpop.permute.xlu0 %1399
        %1401 = vrot.lane.b32.xlu0 %v958, 124
        %v1402 = vpop.permute.xlu0 %1401
        %1403 = vrot.lane.b32.xlu0 %v959, 124
        %v1404 = vpop.permute.xlu0 %1403
        %1405 = vrot.lane.b32.xlu0 %v960, 124
        %v1406 = vpop.permute.xlu0 %1405
        %1407 = vrot.lane.b32.xlu0 %v961, 124
        %v1408 = vpop.permute.xlu0 %1407
        %1409 = vrot.lane.b32.xlu0 %v962, 124
        %v1410 = vpop.permute.xlu0 %1409
        %1411 = vrot.lane.b32.xlu0 %v963, 124
        %v1412 = vpop.permute.xlu0 %1411
        %vm1413 = vcmask 1014784
        %v1414 = vsel %vm1413, %v1398, %v1400
        %v1415 = vsel %vm1413, %v1402, %v1404
        %v1416 = vsel %vm1413, %v1406, %v1408
        %v1417 = vsel %vm1413, %v1410, %v1412
        %v1426 = vadd.f32 %v1371, %v1414
        %v1427 = vadd.f32 %v1373, %v1400
        %v1428 = vadd.f32 %v1375, %v1415
        %v1429 = vadd.f32 %v1377, %v1404
        %v1430 = vadd.f32 %v1381, %v1416
        %v1431 = vadd.f32 %v1383, %v1408
        %v1432 = vadd.f32 %v1385, %v1417
        %v1433 = vadd.f32 %v1387, %v1412
        %vm1434 = vcmp.ge.f32.partialorder %v1426, 0.0
        %vm1435 = vcmp.ge.f32.partialorder %v1427, 0.0
        %vm1436 = vcmp.ge.f32.partialorder %v1428, 0.0
        %vm1437 = vcmp.ge.f32.partialorder %v1429, 0.0
        %vm1438 = vcmp.ge.f32.partialorder %v1430, 0.0
        %vm1439 = vcmp.ge.f32.partialorder %v1431, 0.0
        %vm1440 = vcmp.ge.f32.partialorder %v1432, 0.0
        %vm1441 = vcmp.ge.f32.partialorder %v1433, 0.0
        %v1442 = vmul.f32 %v1426, 0.1
        %v1443 = vmul.f32 %v1427, 0.1
        %v1444 = vmul.f32 %v1428, 0.1
        %v1445 = vmul.f32 %v1429, 0.1
        %v1446 = vmul.f32 %v1430, 0.1
        %v1447 = vmul.f32 %v1431, 0.1
        %v1448 = vmul.f32 %v1432, 0.1
        %v1449 = vmul.f32 %v1433, 0.1
        %v1450 = vsel %vm1434, %v1426, %v1442
        %v1451 = vsel %vm1435, %v1427, %v1443
        %v1452 = vsel %vm1436, %v1428, %v1444
        %v1453 = vsel %vm1437, %v1429, %v1445
        %v1454 = vsel %vm1438, %v1430, %v1446
        %v1455 = vsel %vm1439, %v1431, %v1447
        %v1456 = vsel %vm1440, %v1432, %v1448
        %v1457 = vsel %vm1441, %v1433, %v1449
        %1466 = vrot.lane.b32.xlu0 %v1450, 6
        %v1467 = vpop.permute.xlu0 %1466
        %1468 = vrot.lane.b32.xlu0 %v1451, 6
        %v1469 = vpop.permute.xlu0 %1468
        %1470 = vrot.lane.b32.xlu0 %v1452, 6
        %v1471 = vpop.permute.xlu0 %1470
        %1472 = vrot.lane.b32.xlu0 %v1453, 6
        %v1473 = vpop.permute.xlu0 %1472
        %1474 = vrot.lane.b32.xlu0 %v1454, 6
        %v1475 = vpop.permute.xlu0 %1474
        %1476 = vrot.lane.b32.xlu0 %v1455, 6
        %v1477 = vpop.permute.xlu0 %1476
        %1478 = vrot.lane.b32.xlu0 %v1456, 6
        %v1479 = vpop.permute.xlu0 %1478
        %1480 = vrot.lane.b32.xlu0 %v1457, 6
        %v1481 = vpop.permute.xlu0 %1480
        %vm1482 = vcmask 48128
        %v1483 = vsel %vm1482, %v1467, %v1469
        %v1484 = vsel %vm1482, %v1471, %v1473
        %v1485 = vsel %vm1482, %v1475, %v1477
        %v1486 = vsel %vm1482, %v1479, %v1481
        %v1495 = vsel %vm594, %v1467, 0.0
        %v1496 = vsel %vm595, %v1483, 0.0
        %v1497 = vsel %vm594, %v1471, 0.0
        %v1498 = vsel %vm595, %v1484, 0.0
        %v1499 = vsel %vm594, %v1475, 0.0
        %v1500 = vsel %vm595, %v1485, 0.0
        %v1501 = vsel %vm594, %v1479, 0.0
        %v1502 = vsel %vm595, %v1486, 0.0
        %s1503 = scalar_lea.vmem %s4, 32
        %v1504 = vld [vmem:[%s1503] sm:$0xf]
        %v1505 = vld [vmem:[%s1503 + $0x4] sm:$0xf]
        %v1506 = vld [vmem:[%s1503 + $0x8] sm:$0xf]
        %v1507 = vld [vmem:[%s1503 + $0xc] sm:$0xf]
        %v1508 = vpack.c.bf16 %v1497, %v1495
        %v1509 = vpack.c.bf16 %v1498, %v1496
        %v1510 = vpack.c.bf16 %v1501, %v1499
        %v1511 = vpack.c.bf16 %v1502, %v1500
        %1516 = vrot.lane.b32.xlu0 %v1508, 123
        %v1517 = vpop.permute.xlu0 %1516
        %1518 = vrot.lane.b32.xlu0 %v1509, 123
        %v1519 = vpop.permute.xlu0 %1518
        %1520 = vrot.lane.b32.xlu0 %v1510, 123
        %v1521 = vpop.permute.xlu0 %1520
        %1522 = vrot.lane.b32.xlu0 %v1511, 123
        %v1523 = vpop.permute.xlu0 %1522
        %v1524 = vsel %vm1320, %v1517, %v1519
        %v1525 = vsel %vm1320, %v1521, %v1523
        %1526 = vrot.lane.b32.xlu0 %v1508, 118
        %v1527 = vpop.permute.xlu0 %1526
        %1528 = vrot.lane.b32.xlu0 %v1509, 118
        %v1529 = vpop.permute.xlu0 %1528
        %1530 = vrot.lane.b32.xlu0 %v1510, 118
        %v1531 = vpop.permute.xlu0 %1530
        %1532 = vrot.lane.b32.xlu0 %v1511, 118
        %v1533 = vpop.permute.xlu0 %1532
        %vm1534 = vcmask 965632
        %v1535 = vsel %vm1534, %v1527, %v1529
        %v1536 = vsel %vm1534, %v1531, %v1533
        %1538 = vset.pattern.permute.xlu0 0
        %1539 = vperm.xlu0 %1538, %v564
        %v1540 = vpop.permute.xlu0 %1539
        %1543 = vset.pattern.permute.xlu0 0
        %1544 = vperm.xlu0 %1543, %v565
        %v1545 = vpop.permute.xlu0 %1544
        %1548 = vset.pattern.permute.xlu0 0
        %1549 = vperm.xlu0 %1548, %v566
        %v1550 = vpop.permute.xlu0 %1549
        %1553 = vset.pattern.permute.xlu0 0
        %1554 = vperm.xlu0 %1553, %v567
        %v1555 = vpop.permute.xlu0 %1554
        %v1561 = vunpack.c.l.b16 %v1504
        %v1562 = vunpack.c.l.b16 %v1505
        %v1563 = vunpack.c.l.b16 %v1506
        %v1564 = vunpack.c.l.b16 %v1507
        %v1565 = vpack.c.b16 %v1562, %v1561
        %v1566 = vpack.c.b16 %v1564, %v1563
        %1567 = vrot.lane.b32.xlu0 %v1508, 122
        %v1568 = vpop.permute.xlu0 %1567
        %1569 = vrot.lane.b32.xlu0 %v1509, 122
        %v1570 = vpop.permute.xlu0 %1569
        %1571 = vrot.lane.b32.xlu0 %v1510, 122
        %v1572 = vpop.permute.xlu0 %1571
        %1573 = vrot.lane.b32.xlu0 %v1511, 122
        %v1574 = vpop.permute.xlu0 %1573
        %1575 = vrot.lane.b32.xlu0 %v1524, 122
        %v1576 = vpop.permute.xlu0 %1575
        %1577 = vrot.lane.b32.xlu0 %v1519, 122
        %v1578 = vpop.permute.xlu0 %1577
        %1579 = vrot.lane.b32.xlu0 %v1525, 122
        %v1580 = vpop.permute.xlu0 %1579
        %1581 = vrot.lane.b32.xlu0 %v1523, 122
        %v1582 = vpop.permute.xlu0 %1581
        %1583 = vrot.lane.b32.xlu0 %v1535, 122
        %v1584 = vpop.permute.xlu0 %1583
        %1585 = vrot.lane.b32.xlu0 %v1529, 122
        %v1586 = vpop.permute.xlu0 %1585
        %1587 = vrot.lane.b32.xlu0 %v1536, 122
        %v1588 = vpop.permute.xlu0 %1587
        %1589 = vrot.lane.b32.xlu0 %v1533, 122
        %v1590 = vpop.permute.xlu0 %1589
        %v1591 = vsel %vm1065, %v1568, %v1570
        %v1592 = vsel %vm1065, %v1572, %v1574
        %v1593 = vsel %vm1065, %v1576, %v1578
        %v1594 = vsel %vm1065, %v1580, %v1582
        %v1595 = vsel %vm1065, %v1584, %v1586
        %v1596 = vsel %vm1065, %v1588, %v1590
        %v1610 = vsel %vm676, %v1565, 0
        %v1613 = vsel %vm676, %v1566, 0
        %1615 = vmatprep.subr.bf16.mxu0 0
        %1616 = vmatpush1.bf16.msra.mxu0 0
        %1617 = vmatprep.subr.bf16.mxu0 0
        %1618 = vmatpush1.bf16.msra.mxu0 0
        %1619 = vmatprep.subr.bf16.mxu0 %v1590
        %1620 = vmatpush1.bf16.msra.mxu0 %v1596
        %1621 = vmatprep.subr.bf16.mxu0 %v1586
        %1622 = vmatpush1.bf16.msra.mxu0 %v1595
        %1623 = vmatprep.subr.bf16.mxu0 %v1582
        %1624 = vmatpush1.bf16.msra.mxu0 %v1594
        %1625 = vmatprep.subr.bf16.mxu0 %v1578
        %1626 = vmatpush1.bf16.msra.mxu0 %v1593
        %1627 = vmatprep.subr.bf16.mxu0 %v1574
        %1628 = vmatpush1.bf16.msra.mxu0 %v1592
        %1629 = vmatprep.subr.bf16.mxu0 %v1570
        %1630 = vmatpush1.bf16.msra.mxu0 %v1591
        %1631 = vmatprep.subr.bf16.mxu0 0
        %1632 = vmatpush2.bf16.msra.mxu0 0
        %1633 = vmatprep.subr.bf16.mxu0 0
        %1634 = vmatpush2.bf16.msra.mxu0 0
        %1635 = vmatprep.subr.bf16.mxu0 0
        %1636 = vmatpush2.bf16.msra.mxu0 0
        %1637 = vmatprep.subr.bf16.mxu0 0
        %1638 = vmatpush2.bf16.msra.mxu0 0
        %1639 = vmatprep.subr.bf16.mxu0 0
        %1640 = vmatpush2.bf16.msra.mxu0 0
        %1641 = vmatprep.subr.bf16.mxu0 0
        %1642 = vmatpush2.bf16.msra.mxu0 0
        %1643 = vmatprep.subr.bf16.mxu0 0
        %1644 = vmatpush2.bf16.msra.mxu0 0
        %1645 = vmatprep.subr.bf16.mxu0 0
        %1646 = vmatpush2.bf16.msra.mxu0 0
        %1647 = vmatprep.mubr.bf16.mxu0 0
        %1648 = vmatmul.mubr.bf16.gmra.mxu0 %v1610
        %v1649 = vpop.f32.mrf.mxu0
        %v1650 = vadd.f32 %v1540, %v1649
        %v1651 = vpop.f32.mrf.mxu0
        %v1652 = vadd.f32 %v1540, %v1651
        %v1653 = vpop.f32.mrf.mxu0
        %v1654 = vadd.f32 %v1545, %v1653
        %v1655 = vpop.f32.mrf.mxu0
        %v1656 = vadd.f32 %v1545, %v1655
        %1657 = vmatprep.mubr.bf16.mxu0 0
        %1658 = vmatmul.mubr.bf16.gmra.mxu0 %v1613
        %v1659 = vpop.f32.mrf.mxu0
        %v1660 = vadd.f32 %v1550, %v1659
        %v1661 = vpop.f32.mrf.mxu0
        %v1662 = vadd.f32 %v1550, %v1661
        %v1663 = vpop.f32.mrf.mxu0
        %v1664 = vadd.f32 %v1555, %v1663
        %v1665 = vpop.f32.mrf.mxu0
        %v1666 = vadd.f32 %v1555, %v1665
        %1667 = vdwg.mxu0
        %v1668 = vtanh.pop %v1650
        %v1669 = vtanh.pop %v1652
        %v1670 = vtanh.pop %v1654
        %v1671 = vtanh.pop %v1656
        %v1672 = vxor.u32 %v1660, 2147483648
        %v1673 = vxor.u32 %v1662, 2147483648
        %v1674 = vxor.u32 %v1664, 2147483648
        %v1675 = vxor.u32 %v1666, 2147483648
        %v1676 = vmul.f32 %v1672, 1.442695
        %v1677 = vpow.pop %v1676
        %v1678 = vmul.f32 %v1673, 1.442695
        %v1679 = vpow.pop %v1678
        %v1680 = vmul.f32 %v1674, 1.442695
        %v1681 = vpow.pop %v1680
        %v1682 = vmul.f32 %v1675, 1.442695
        %v1683 = vpow.pop %v1682
        %v1684 = vadd.f32 %v1677, 1.0
        %v1685 = vadd.f32 %v1679, 1.0
        %v1686 = vadd.f32 %v1681, 1.0
        %v1687 = vadd.f32 %v1683, 1.0
        %v1688 = vrcp.pop %v1684
        %v1689 = vmul.f32 1.0, %v1688
        %v1690 = vrcp.pop %v1685
        %v1691 = vmul.f32 1.0, %v1690
        %v1692 = vrcp.pop %v1686
        %v1693 = vmul.f32 1.0, %v1692
        %v1694 = vrcp.pop %v1687
        %v1695 = vmul.f32 1.0, %v1694
        %v1696 = vmul.f32 %v1668, %v1689
        %v1697 = vmul.f32 %v1669, %v1691
        %v1698 = vmul.f32 %v1670, %v1693
        %v1699 = vmul.f32 %v1671, %v1695
        %1704 = vrot.lane.b32.xlu0 %v1696, 11
        %v1705 = vpop.permute.xlu0 %1704
        %1706 = vrot.lane.b32.xlu0 %v1697, 11
        %v1707 = vpop.permute.xlu0 %1706
        %1708 = vrot.lane.b32.xlu0 %v1698, 11
        %v1709 = vpop.permute.xlu0 %1708
        %1710 = vrot.lane.b32.xlu0 %v1699, 11
        %v1711 = vpop.permute.xlu0 %1710
        %vm1712 = vcmask 89088
        %v1713 = vsel %vm1712, %v1705, %v1707
        %v1714 = vsel %vm1712, %v1709, %v1711
        %v1719 = vsel %vm594, %v1705, 0.0
        %v1720 = vsel %vm595, %v1713, 0.0
        %v1721 = vsel %vm594, %v1709, 0.0
        %v1722 = vsel %vm595, %v1714, 0.0
        %s1723 = scalar_lea.vmem %s5, 32
        %v1724 = vld [vmem:[%s1723] sm:$0xf]
        %v1725 = vld [vmem:[%s1723 + $0x4] sm:$0xf]
        %v1726 = vld [vmem:[%s1723 + $0x8] sm:$0xf]
        %v1727 = vld [vmem:[%s1723 + $0xc] sm:$0xf]
        %v1728 = vpack.c.bf16 %v1721, %v1719
        %v1729 = vpack.c.bf16 %v1722, %v1720
        %1732 = vrot.lane.b32.xlu0 %v1728, 127
        %v1733 = vpop.permute.xlu0 %1732
        %1734 = vrot.lane.b32.xlu0 %v1729, 127
        %v1735 = vpop.permute.xlu0 %1734
        %v1736 = vsel %vm624, %v1733, %v1735
        %1737 = vrot.lane.b32.xlu0 %v1728, 126
        %v1738 = vpop.permute.xlu0 %1737
        %1739 = vrot.lane.b32.xlu0 %v1729, 126
        %v1740 = vpop.permute.xlu0 %1739
        %v1741 = vsel %vm639, %v1738, %v1740
        %s1742 = scalar_lea.vmem %s6, 64
        %v1743 = vld [vmem:[%s1742] sm:$0xff]
        %v1744 = vld [vmem:[%s1742 + $0x8] sm:$0xff]
        %v1745 = vld [vmem:[%s1742 + $0x10] sm:$0xff]
        %v1746 = vld [vmem:[%s1742 + $0x18] sm:$0xff]
        %1748 = vset.pattern.permute.xlu0 0
        %1749 = vperm.xlu0 %1748, %v1743
        %v1750 = vpop.permute.xlu0 %1749
        %1753 = vset.pattern.permute.xlu0 0
        %1754 = vperm.xlu0 %1753, %v1744
        %v1755 = vpop.permute.xlu0 %1754
        %1758 = vset.pattern.permute.xlu0 0
        %1759 = vperm.xlu0 %1758, %v1745
        %v1760 = vpop.permute.xlu0 %1759
        %1763 = vset.pattern.permute.xlu0 0
        %1764 = vperm.xlu0 %1763, %v1746
        %v1765 = vpop.permute.xlu0 %1764
        %v1771 = vunpack.c.l.b16 %v1724
        %v1772 = vunpack.c.l.b16 %v1725
        %v1773 = vunpack.c.l.b16 %v1726
        %v1774 = vunpack.c.l.b16 %v1727
        %v1775 = vpack.c.b16 %v1772, %v1771
        %v1776 = vpack.c.b16 %v1774, %v1773
        %1777 = vrot.lane.b32.xlu0 %v1728, 117
        %v1778 = vpop.permute.xlu0 %1777
        %1779 = vrot.lane.b32.xlu0 %v1729, 117
        %v1780 = vpop.permute.xlu0 %1779
        %1781 = vrot.lane.b32.xlu0 %v1736, 117
        %v1782 = vpop.permute.xlu0 %1781
        %1783 = vrot.lane.b32.xlu0 %v1735, 117
        %v1784 = vpop.permute.xlu0 %1783
        %1785 = vrot.lane.b32.xlu0 %v1741, 117
        %v1786 = vpop.permute.xlu0 %1785
        %1787 = vrot.lane.b32.xlu0 %v1740, 117
        %v1788 = vpop.permute.xlu0 %1787
        %vm1789 = vcmask 957440
        %v1790 = vsel %vm1789, %v1778, %v1780
        %v1791 = vsel %vm1789, %v1782, %v1784
        %v1792 = vsel %vm1789, %v1786, %v1788
        %v1797 = vsel %vm859, %v1775, 0
        %v1800 = vsel %vm859, %v1776, 0
        %1802 = vmatprep.subr.bf16.mxu0 0
        %1803 = vmatpush1.bf16.msra.mxu0 0
        %1804 = vmatprep.subr.bf16.mxu0 0
        %1805 = vmatpush1.bf16.msra.mxu0 0
        %1806 = vmatprep.subr.bf16.mxu0 0
        %1807 = vmatpush1.bf16.msra.mxu0 0
        %1808 = vmatprep.subr.bf16.mxu0 0
        %1809 = vmatpush1.bf16.msra.mxu0 0
        %1810 = vmatprep.subr.bf16.mxu0 0
        %1811 = vmatpush1.bf16.msra.mxu0 0
        %1812 = vmatprep.subr.bf16.mxu0 0
        %1813 = vmatpush1.bf16.msra.mxu0 %v1792
        %1814 = vmatprep.subr.bf16.mxu0 0
        %1815 = vmatpush1.bf16.msra.mxu0 %v1791
        %1816 = vmatprep.subr.bf16.mxu0 0
        %1817 = vmatpush1.bf16.msra.mxu0 %v1790
        %1818 = vmatprep.subr.bf16.mxu0 0
        %1819 = vmatpush2.bf16.msra.mxu0 0
        %1820 = vmatprep.subr.bf16.mxu0 0
        %1821 = vmatpush2.bf16.msra.mxu0 0
        %1822 = vmatprep.subr.bf16.mxu0 0
        %1823 = vmatpush2.bf16.msra.mxu0 0
        %1824 = vmatprep.subr.bf16.mxu0 0
        %1825 = vmatpush2.bf16.msra.mxu0 0
        %1826 = vmatprep.subr.bf16.mxu0 0
        %1827 = vmatpush2.bf16.msra.mxu0 0
        %1828 = vmatprep.subr.bf16.mxu0 0
        %1829 = vmatpush2.bf16.msra.mxu0 0
        %1830 = vmatprep.subr.bf16.mxu0 0
        %1831 = vmatpush2.bf16.msra.mxu0 0
        %1832 = vmatprep.subr.bf16.mxu0 0
        %1833 = vmatpush2.bf16.msra.mxu0 0
        %1834 = vmatprep.mubr.bf16.mxu0 0
        %1835 = vmatmul.mubr.bf16.gmra.mxu0 %v1797
        %v1836 = vpop.f32.mrf.mxu0
        %v1837 = vadd.f32 %v1750, %v1836
        %v1838 = vpop.f32.mrf.mxu0
        %v1839 = vpop.f32.mrf.mxu0
        %v1840 = vadd.f32 %v1755, %v1839
        %v1841 = vpop.f32.mrf.mxu0
        %1842 = vmatprep.mubr.bf16.mxu0 0
        %1843 = vmatmul.mubr.bf16.gmra.mxu0 %v1800
        %v1844 = vpop.f32.mrf.mxu0
        %v1845 = vadd.f32 %v1760, %v1844
        %v1846 = vpop.f32.mrf.mxu0
        %v1847 = vpop.f32.mrf.mxu0
        %v1848 = vadd.f32 %v1765, %v1847
        %v1849 = vpop.f32.mrf.mxu0
        %1850 = vdwg.mxu0
        %1859 = vrot.lane.b32.xlu0 %v1426, 122
        %v1860 = vpop.permute.xlu0 %1859
        %1861 = vrot.lane.b32.xlu0 %v1427, 122
        %v1862 = vpop.permute.xlu0 %1861
        %1863 = vrot.lane.b32.xlu0 %v1428, 122
        %v1864 = vpop.permute.xlu0 %1863
        %1865 = vrot.lane.b32.xlu0 %v1429, 122
        %v1866 = vpop.permute.xlu0 %1865
        %1867 = vrot.lane.b32.xlu0 %v1430, 122
        %v1868 = vpop.permute.xlu0 %1867
        %1869 = vrot.lane.b32.xlu0 %v1431, 122
        %v1870 = vpop.permute.xlu0 %1869
        %1871 = vrot.lane.b32.xlu0 %v1432, 122
        %v1872 = vpop.permute.xlu0 %1871
        %1873 = vrot.lane.b32.xlu0 %v1433, 122
        %v1874 = vpop.permute.xlu0 %1873
        %vm1875 = vcmask 998400
        %v1876 = vsel %vm1875, %v1860, %v1862
        %v1877 = vsel %vm1875, %v1864, %v1866
        %v1878 = vsel %vm1875, %v1868, %v1870
        %v1879 = vsel %vm1875, %v1872, %v1874
        %v1884 = vadd.f32 %v1837, %v1876
        %v1885 = vadd.f32 %v1840, %v1877
        %v1886 = vadd.f32 %v1845, %v1878
        %v1887 = vadd.f32 %v1848, %v1879
        %1888 = vst [vmem:[%s460] sm:$0xff] %v1884
        %1889 = vst [vmem:[%s460 + $0x8] sm:$0xff] %v1885
        %1890 = vst [vmem:[%s460 + $0x10] sm:$0xff] %v1886
        %1891 = vst [vmem:[%s460 + $0x18] sm:$0xff] %v1887
        %s1892 = sand.u32 %s234, 1
        %s1893 = scalar_lea.sflag [#allocation5], %s1892
        %s1894 = sand.u32 %s234, 1
        %s1895 = smul.addr %s1894, 32
        %s1896 = scalar_lea.vmem [#allocation8], %s1895
        // Predicated region
        $region95: #{tpu_custom_call.1} parent=81 // pred_check
          %p1897 = pneg %p244
        $region96: #{tpu_custom_call.1} parent=81 // pred_check_branch
          %1899 = sbr.rel (%p1897) target = $region98
        $region97: #{tpu_custom_call.1} parent=81 // pred_region
          %s1901 = ssub.s32 512, 512
          %1902 = vsyncadd %s1893, %s1901
          %s1903 = smul.addr %s31, 12
          %s1904 = sadd.s32 %s32, %s1903
          %s1905 = smul.addr %s1904, 128
          %s1906 = scalar_lea.hbm %s7, %s1905
          %s1907 = sshll.u32 %s1896, 4
          %s1908 = int_to_ptr.vmem [resolvable:$true] %s1907
          %1913 = dma.vmem_to_hbm [thread:$0]  %s1908, 512, %s1906, %s1893, 128, 384, 8
        $region98: #{tpu_custom_call.1} parent=81 // pred_fallthru
          _
      $region82: #{tpu_custom_call.1} parent=5 // pred_fallthru
        _
      %p1914 = scmp.le.s32.totalorder 2, %s22
      // Predicated region
      $region99: #{tpu_custom_call.1} parent=5 // pred_check
        %p1915 = pneg %p1914
      $region100: #{tpu_custom_call.1} parent=5 // pred_check_branch
        %1917 = sbr.rel (%p1915) target = $region102
      $region101: #{tpu_custom_call.1} parent=5 // pred_region
        %s1918 = ssub.s32 %s22, 2
        // Predicated region
        $region103: #{tpu_custom_call.1} parent=101 // pred_check
          %p1919 = pneg %p250
        $region104: #{tpu_custom_call.1} parent=101 // pred_check_branch
          %1921 = sbr.rel (%p1919) target = $region106
        $region105: #{tpu_custom_call.1} parent=101 // pred_region
          %s1922 = sand.u32 %s235, 1
          %s1923 = scalar_lea.sflag [#allocation5], %s1922
          %s1924 = sand.u32 %s235, 1
          %s1925 = smul.addr %s1924, 32
          %s1926 = scalar_lea.vmem [#allocation8], %s1925
          %1927 = dma.done %s1923, 512
        $region106: #{tpu_custom_call.1} parent=101 // pred_fallthru
          _
      $region102: #{tpu_custom_call.1} parent=5 // pred_fallthru
        _
    $region6: #{tpu_custom_call.1} parent=1 // loop_footer
      %s26 = sadd.s32 1, %s22
    $region7: #{tpu_custom_call.1} parent=1 // loop_footer_branch
      %21 = sbr.rel target = $region3
    $region8: #{tpu_custom_call.1} parent=1 // loop_exit
      _
    %1928 = vsyncpa [#allocation4], 1
    %s1929 = scalar_lea.sflag [#allocation4], 1
    %1930 = vsyncpa %s1929, 1
    %1931 = vsyncpa [#allocation7], 1
    %s1932 = scalar_lea.sflag [#allocation7], 1
    %1933 = vsyncpa %s1932, 1
    %1934 = vsyncpa [#allocation5], 1
    %s1935 = scalar_lea.sflag [#allocation5], 1
    %1936 = vsyncpa %s1935, 1

</llo_original>
